<compile_context>
chip_gen: v6e
topology: v6e:2x2x1
jax: 0.10.0
libtpu: 0.0.40
codegen_flags: <defaults>
</compile_context>

<pallas_src>
import functools
import math

import jax
import jax.numpy as jnp
from jax.experimental import pallas as pl
from jax.experimental.pallas import tpu as pltpu


# ------------------------------ fused layer kernel ------------------------------

def _block_kernel(q_ref, k_ref, v_ref, sin_ref, cos_ref, flip_ref,
                  wq_ref, bq_ref, wk_ref, bk_ref, wv_ref, bv_ref,
                  wo_ref, bo_ref, ln1g_ref, ln1b_ref, ln2g_ref, ln2b_ref,
                  w1_ref, b1_ref, w2_ref, b2_ref, o_ref, *, heads):
    """One grid step = one MHA 'batch' element (dim1 of the reference layout),
    with all heads; everything stays in VMEM/vregs."""
    q_in = q_ref[0]                      # (N, E)  float32
    k_in = k_ref[0]
    v_in = v_ref[0]
    sin = sin_ref[0]                     # (1, E)
    cos = cos_ref[0]
    flip_m = flip_ref[...]               # (E, E) anti-diagonal permutation (f32)

    def rope(x):
        # reference: x * cos + x.flip(-1) * sin ; the flip is done on the MXU (x @ J).
        xf = jnp.dot(x, flip_m, preferred_element_type=jnp.float32)
        return x * cos + xf * sin

    def layer_norm(x, g, b):
        mu = jnp.mean(x, axis=-1, keepdims=True)
        var = jnp.mean((x - mu) ** 2, axis=-1, keepdims=True)
        return (x - mu) * jax.lax.rsqrt(var + 1e-5) * g + b

    def dense(x, w_r, b_r):
        # bf16 MXU operands, f32 accumulation, f32 bias add.
        return (jnp.dot(x.astype(w_r.dtype), w_r[...],
                        preferred_element_type=jnp.float32) + b_r[...])

    q_r = rope(q_in)
    k_r = rope(k_in)
    v_r = rope(v_in)

    qn = layer_norm(q_r, ln1g_ref[...], ln1b_ref[...])
    qp = dense(qn,  wq_ref, bq_ref)      # (N, E)
    kp = dense(k_r, wk_ref, bk_ref)
    vp = dense(v_r, wv_ref, bv_ref)

    embed = q_in.shape[-1]
    hd = embed // heads
    scale = 1.0 / math.sqrt(hd)
    ctx_parts = []
    for h in range(heads):               # all heads of this batch element (lane slices)
        sl = slice(h * hd, (h + 1) * hd)
        qh, kh, vh = qp[:, sl], kp[:, sl], vp[:, sl]
        s = jax.lax.dot_general(qh, kh, (((1,), (1,)), ((), ())),
                                preferred_element_type=jnp.float32) * scale
        s = s - jnp.max(s, axis=-1, keepdims=True)
        p = jnp.exp(s)
        p = p * pl.reciprocal(jnp.sum(p, axis=-1, keepdims=True), approx=True)
        ctx_parts.append(jnp.dot(p, vh, preferred_element_type=jnp.float32))
    ctx = jnp.concatenate(ctx_parts, axis=-1)   # (N, E)

    attn = dense(ctx, wo_ref, bo_ref)
    x = attn + q_r                       # dropout(p=0) == identity; residual on rope'd query

    xn = layer_norm(x, ln2g_ref[...], ln2b_ref[...])
    hff = dense(xn, w1_ref, b1_ref)      # (N, fe*E)
    half = hff.shape[-1] // 2
    a, b = hff[:, :half], hff[:, half:]
    g = a * (b * jax.nn.sigmoid(b))      # SwiGLU: a * silu(b), kept in f32
    ff = dense(g, w2_ref, b2_ref)        # (N, E)
    o_ref[0] = (ff + x).astype(o_ref.dtype)


def transformer_block(lp, value, key, query, mask, sin3, cos3, flip_m, heads):
    """Fused TransformerBlock.forward. value/key/query are (S, N, E):
    dim0 = reference dim1 (MHA batch axis), dim1 = reference dim0 (MHA sequence axis)."""
    if mask is not None:
        # TODO(synk): additive attn_mask path omitted; the reference test uses mask=None.
        raise NotImplementedError("attn_mask not supported (reference is run with mask=None)")

    S, N, E = query.shape
    row = pl.BlockSpec((1, N, E), lambda s: (s, 0, 0))
    tbl = pl.BlockSpec((1, 1, E), lambda s: (s, 0, 0))

    def full(arr):
        return pl.BlockSpec(arr.shape, lambda s: (0, 0))

    operands = (query, key, value, sin3, cos3, flip_m,
                lp['wq'], lp['bq'], lp['wk'], lp['bk'], lp['wv'], lp['bv'],
                lp['wo'], lp['bo'], lp['ln1_g'], lp['ln1_b'], lp['ln2_g'], lp['ln2_b'],
                lp['w_ff1'], lp['b_ff1'], lp['w_ff2'], lp['b_ff2'])
    in_specs = [row, row, row, tbl, tbl] + [full(a) for a in operands[5:]]

    return pl.pallas_call(
        functools.partial(_block_kernel, heads=heads),
        grid=(S,),
        in_specs=in_specs,
        out_specs=row,
        out_shape=jax.ShapeDtypeStruct((S, N, E), jnp.float32),
        compiler_params=pltpu.CompilerParams(dimension_semantics=("parallel",)),
    )(*operands)


# ------------------------------ vocab head kernel ------------------------------

def _vocab_head_kernel(x_ref, w_ref, b_ref, o_ref):
    o_ref[...] = (jnp.dot(x_ref[...].astype(w_ref.dtype), w_ref[...],
                          preferred_element_type=jnp.float32) + b_ref[...])


def vocab_head(x2d, w_pad, b_pad, vocab):
    M, E = x2d.shape
    Vp = w_pad.shape[1]                  # vocab padded to a multiple of 128 (lane-dense)
    tm = 8 if M % 8 == 0 else M
    out = pl.pallas_call(
        _vocab_head_kernel,
        grid=(M // tm,),
        in_specs=[pl.BlockSpec((tm, E), lambda i: (i, 0)),
                  pl.BlockSpec((E, Vp), lambda i: (0, 0)),
                  pl.BlockSpec((1, Vp), lambda i: (0, 0))],
        out_specs=pl.BlockSpec((tm, Vp), lambda i: (i, 0)),
        out_shape=jax.ShapeDtypeStruct((M, Vp), jnp.float32),
        compiler_params=pltpu.CompilerParams(dimension_semantics=("parallel",)),
    )(x2d, w_pad, b_pad)
    return out[:, :vocab]


# --------------------------------- glue / model ---------------------------------

def rope_tables(seq_len, embed):
    """Reproduces RotaryPositionalEncoding(embed//2) + the chunk / repeat_interleave
    layout of apply_rotary_pos_emb, plus the (E, E) flip matrix used in-kernel."""
    rot = embed // 2
    inv_freq = 1.0 / (10000.0 ** (jnp.arange(0, rot, 2, dtype=jnp.float32) / rot))
    t = jnp.arange(seq_len, dtype=jnp.float32)
    freqs = t[:, None] * inv_freq[None, :]
    emb = jnp.concatenate([freqs, freqs], axis=-1)                        # (S, rot)
    sincos = jnp.stack([jnp.sin(emb), jnp.cos(emb)], axis=-1).reshape(seq_len, 2 * rot)
    sin_f = jnp.repeat(sincos[:, :embed // 2], 2, axis=-1)                # (S, E)
    cos_f = jnp.repeat(sincos[:, embed // 2:], 2, axis=-1)                # (S, E)
    idx = jnp.arange(embed)
    flip_m = (idx[:, None] + idx[None, :] == embed - 1).astype(jnp.float32)
    return sin_f[:, None, :], cos_f[:, None, :], flip_m                   # (S,1,E) x2, (E,E)


def _embed(word_emb, pos_emb, tokens):
    N, S = tokens.shape
    x = word_emb[tokens] + pos_emb[jnp.arange(S)][None, :, :]             # (N, S, E)
    return jnp.transpose(x.astype(jnp.float32), (1, 0, 2))                # (S, N, E)


def encoder_forward(enc_params, src_tokens, src_mask, heads):
    x = _embed(enc_params['word_emb'], enc_params['pos_emb'], src_tokens)
    S, _, E = x.shape
    sin3, cos3, flip_m = rope_tables(S, E)          # hoisted: once per forward
    for lp in enc_params['layers']:
        x = transformer_block(lp, x, x, x, src_mask, sin3, cos3, flip_m, heads)
    return x                                        # (S, N, E)


def decoder_forward(dec_params, trg_tokens, enc_out, src_mask, trg_mask, heads, trg_vocab):
    del src_mask                                    # unused by the reference Decoder too
    x = _embed(dec_params['word_emb'], dec_params['pos_emb'], trg_tokens)
    S, N, E = x.shape
    sin3, cos3, flip_m = rope_tables(S, E)
    for lp in dec_params['layers']:
        # reference: layer(value=x, key=enc_out, query=x, mask=trg_mask)
        x = transformer_block(lp, x, enc_out, x, trg_mask, sin3, cos3, flip_m, heads)
    logits = vocab_head(x.reshape(S * N, E), dec_params['w_out'], dec_params['b_out'],
                        trg_vocab)
    return jnp.transpose(logits.reshape(S, N, trg_vocab), (1, 0, 2))      # (N, S, V)


def transformer_forward(params, src_tokens, trg_tokens, src_mask, trg_mask, *,
                        heads, trg_vocab):
    enc_out = encoder_forward(params['encoder'], src_tokens, src_mask, heads)
    return decoder_forward(params['decoder'], trg_tokens, enc_out, src_mask, trg_mask,
                           heads, trg_vocab)


# ----------------------------------- init -----------------------------------

def init_params(key, src_vocab, trg_vocab, embed, num_layers, fe, max_length):
    d_ff = fe * embed
    d_half = d_ff // 2
    vpad = ((trg_vocab + 127) // 128) * 128

    key_box = [key]

    def nxt():
        key_box[0], sub = jax.random.split(key_box[0])
        return sub

    def w(shape, scale=0.05):
        return jax.random.normal(nxt(), shape, jnp.float32) * scale

    def make_layer():
        return {
            'wq': w((embed, embed)).astype(jnp.bfloat16), 'bq': w((1, embed), 0.01),
            'wk': w((embed, embed)).astype(jnp.bfloat16), 'bk': w((1, embed), 0.01),
            'wv': w((embed, embed)).astype(jnp.bfloat16), 'bv': w((1, embed), 0.01),
            'wo': w((embed, embed)).astype(jnp.bfloat16), 'bo': w((1, embed), 0.01),
            'ln1_g': jnp.ones((1, embed), jnp.float32),
            'ln1_b': jnp.zeros((1, embed), jnp.float32),
            'ln2_g': jnp.ones((1, embed), jnp.float32),
            'ln2_b': jnp.zeros((1, embed), jnp.float32),
            'w_ff1': w((embed, d_ff)).astype(jnp.bfloat16), 'b_ff1': w((1, d_ff), 0.01),
            # TODO(synk): the reference declares Linear(fe*E, E) after SwiGLU, but SwiGLU
            # halves the feature dim to fe*E//2, so the reference forward would raise a
            # shape error in PyTorch; the second FFN linear is sized (fe*E//2, E) here.
            'w_ff2': w((d_half, embed)).astype(jnp.bfloat16), 'b_ff2': w((1, embed), 0.01),
        }

    w_out = w((embed, trg_vocab))
    b_out = w((1, trg_vocab), 0.01)
    params = {
        'encoder': {
            'word_emb': w((src_vocab, embed), 0.1),
            'pos_emb': w((max_length, embed), 0.1),
            'layers': [make_layer() for _ in range(num_layers)],
        },
        'decoder': {
            'word_emb': w((trg_vocab, embed), 0.1),
            'pos_emb': w((max_length, embed), 0.1),
            'layers': [make_layer() for _ in range(num_layers)],
            # vocab dim zero-padded to a multiple of 128 for unmasked lane-dense stores
            'w_out': jnp.zeros((embed, vpad), jnp.bfloat16).at[:, :trg_vocab].set(
                w_out.astype(jnp.bfloat16)),
            'b_out': jnp.zeros((1, vpad), jnp.float32).at[:, :trg_vocab].set(b_out),
        },
    }
    return params


if __name__ == "__main__":
    src_vocab_size = 50
    trg_vocab_size = 50
    embed_size = 32
    num_layers = 2
    heads = 4
    forward_expansion = 4
    dropout = 0.0          # identity in this configuration
    max_length = 16
    N, seq_len = 2, 8

    root = jax.random.PRNGKey(0)
    k_par, k_src, k_trg = jax.random.split(root, 3)
    params = init_params(k_par, src_vocab_size, trg_vocab_size, embed_size,
                         num_layers, forward_expansion, max_length)
    src_tokens = jax.random.randint(k_src, (N, seq_len), 0, src_vocab_size)
    trg_tokens = jax.random.randint(k_trg, (N, seq_len), 0, trg_vocab_size)

    fwd = jax.jit(transformer_forward, static_argnames=("heads", "trg_vocab"))
    out = fwd(params, src_tokens, trg_tokens, None, None,
              heads=heads, trg_vocab=trg_vocab_size)
    out = jax.block_until_ready(out)
    assert out.shape == (N, seq_len, trg_vocab_size)
    assert bool(jnp.all(jnp.isfinite(out)))
    print("KERNEL_OK")
</pallas_src>

<mosaic_0001>
module attributes {stable_mosaic.version = 11 : i64} {
  func.func @_vocab_head_kernel(%arg0: i32, %arg1: memref<8x32xf32, #tpu.memory_space<vmem>>, %arg2: memref<32x128xbf16, #tpu.memory_space<vmem>>, %arg3: memref<1x128xf32, #tpu.memory_space<vmem>>, %arg4: memref<8x128xf32, #tpu.memory_space<vmem>>) attributes {dimension_semantics = [#tpu.dimension_semantics<parallel>], iteration_bounds = array<i64: 2>, scalar_prefetch = 0 : i64, scratch_operands = 0 : i64, tpu.core_type = #tpu.core_type<tc>, window_params = [{transform_indices = @transform_0, window_bounds = array<i64: 8, 32>}, {pipeline_mode = #tpu.pipeline_mode<synchronous>, transform_indices = @transform_1, window_bounds = array<i64: 32, 128>}, {pipeline_mode = #tpu.pipeline_mode<synchronous>, transform_indices = @transform_2, window_bounds = array<i64: 1, 128>}, {transform_indices = @transform_3, window_bounds = array<i64: 8, 128>}]} {
    %c0 = arith.constant 0 : index
    %c0_0 = arith.constant 0 : index
    %0 = vector.load %arg1[%c0, %c0_0] : memref<8x32xf32, #tpu.memory_space<vmem>>, vector<8x32xf32>
    %1 = arith.truncf %0 : vector<8x32xf32> to vector<8x32xbf16>
    %c0_1 = arith.constant 0 : index
    %c0_2 = arith.constant 0 : index
    %2 = vector.load %arg2[%c0_1, %c0_2] : memref<32x128xbf16, #tpu.memory_space<vmem>>, vector<32x128xbf16>
    %cst = arith.constant dense<0.000000e+00> : vector<8x128xf32>
    %3 = tpu.matmul %1, %2, %cst {dimension_numbers = #tpu.dot_dimension_numbers<[1], [0], [0], [1], [0, 0, 1, 1], [], []>} : vector<8x32xbf16>, vector<32x128xbf16>, vector<8x128xf32> -> vector<8x128xf32>
    %c0_3 = arith.constant 0 : index
    %c0_4 = arith.constant 0 : index
    %4 = vector.load %arg3[%c0_3, %c0_4] : memref<1x128xf32, #tpu.memory_space<vmem>>, vector<1x128xf32>
    %5 = vector.broadcast %4 : vector<1x128xf32> to vector<8x128xf32>
    %6 = arith.addf %3, %5 : vector<8x128xf32>
    %c0_5 = arith.constant 0 : index
    %c0_6 = arith.constant 0 : index
    %7 = vector.load %arg4[%c0_5, %c0_6] : memref<8x128xf32, #tpu.memory_space<vmem>>, vector<8x128xf32>
    tpu.vector_store %arg4[%c0_5, %c0_6], %6 {strides = array<i32>} : memref<8x128xf32, #tpu.memory_space<vmem>>, vector<8x128xf32>,
    return
  }
  func.func @transform_0(%arg0: i32) -> (i32, i32) {
    %c0_i32 = arith.constant 0 : i32
    %c0_i32_0 = arith.constant 0 : i32
    return %arg0, %c0_i32 : i32, i32
  }
  func.func @transform_1(%arg0: i32) -> (i32, i32) {
    %c0_i32 = arith.constant 0 : i32
    %c0_i32_0 = arith.constant 0 : i32
    %c0_i32_1 = arith.constant 0 : i32
    return %c0_i32, %c0_i32_0 : i32, i32
  }
  func.func @transform_2(%arg0: i32) -> (i32, i32) {
    %c0_i32 = arith.constant 0 : i32
    %c0_i32_0 = arith.constant 0 : i32
    %c0_i32_1 = arith.constant 0 : i32
    return %c0_i32, %c0_i32_0 : i32, i32
  }
  func.func @transform_3(%arg0: i32) -> (i32, i32) {
    %c0_i32 = arith.constant 0 : i32
    %c0_i32_0 = arith.constant 0 : i32
    return %arg0, %c0_i32 : i32, i32
  }
}

module attributes {stable_mosaic.version = 11 : i64} {
  func.func @_block_kernel(%arg0: i32, %arg1: memref<1x2x32xf32, #tpu.memory_space<vmem>>, %arg2: memref<1x2x32xf32, #tpu.memory_space<vmem>>, %arg3: memref<1x2x32xf32, #tpu.memory_space<vmem>>, %arg4: memref<1x1x32xf32, #tpu.memory_space<vmem>>, %arg5: memref<1x1x32xf32, #tpu.memory_space<vmem>>, %arg6: memref<32x32xf32, #tpu.memory_space<vmem>>, %arg7: memref<32x32xbf16, #tpu.memory_space<vmem>>, %arg8: memref<1x32xf32, #tpu.memory_space<vmem>>, %arg9: memref<32x32xbf16, #tpu.memory_space<vmem>>, %arg10: memref<1x32xf32, #tpu.memory_space<vmem>>, %arg11: memref<32x32xbf16, #tpu.memory_space<vmem>>, %arg12: memref<1x32xf32, #tpu.memory_space<vmem>>, %arg13: memref<32x32xbf16, #tpu.memory_space<vmem>>, %arg14: memref<1x32xf32, #tpu.memory_space<vmem>>, %arg15: memref<1x32xf32, #tpu.memory_space<vmem>>, %arg16: memref<1x32xf32, #tpu.memory_space<vmem>>, %arg17: memref<1x32xf32, #tpu.memory_space<vmem>>, %arg18: memref<1x32xf32, #tpu.memory_space<vmem>>, %arg19: memref<32x128xbf16, #tpu.memory_space<vmem>>, %arg20: memref<1x128xf32, #tpu.memory_space<vmem>>, %arg21: memref<64x32xbf16, #tpu.memory_space<vmem>>, %arg22: memref<1x32xf32, #tpu.memory_space<vmem>>, %arg23: memref<1x2x32xf32, #tpu.memory_space<vmem>>) attributes {dimension_semantics = [#tpu.dimension_semantics<parallel>], iteration_bounds = array<i64: 8>, scalar_prefetch = 0 : i64, scratch_operands = 0 : i64, tpu.core_type = #tpu.core_type<tc>, window_params = [{transform_indices = @transform_0, window_bounds = array<i64: 1, 2, 32>}, {transform_indices = @transform_1, window_bounds = array<i64: 1, 2, 32>}, {transform_indices = @transform_2, window_bounds = array<i64: 1, 2, 32>}, {transform_indices = @transform_3, window_bounds = array<i64: 1, 1, 32>}, {transform_indices = @transform_4, window_bounds = array<i64: 1, 1, 32>}, {pipeline_mode = #tpu.pipeline_mode<synchronous>, transform_indices = @transform_5, window_bounds = array<i64: 32, 32>}, {pipeline_mode = #tpu.pipeline_mode<synchronous>, transform_indices = @transform_6, window_bounds = array<i64: 32, 32>}, {pipeline_mode = #tpu.pipeline_mode<synchronous>, transform_indices = @transform_7, window_bounds = array<i64: 1, 32>}, {pipeline_mode = #tpu.pipeline_mode<synchronous>, transform_indices = @transform_8, window_bounds = array<i64: 32, 32>}, {pipeline_mode = #tpu.pipeline_mode<synchronous>, transform_indices = @transform_9, window_bounds = array<i64: 1, 32>}, {pipeline_mode = #tpu.pipeline_mode<synchronous>, transform_indices = @transform_10, window_bounds = array<i64: 32, 32>}, {pipeline_mode = #tpu.pipeline_mode<synchronous>, transform_indices = @transform_11, window_bounds = array<i64: 1, 32>}, {pipeline_mode = #tpu.pipeline_mode<synchronous>, transform_indices = @transform_12, window_bounds = array<i64: 32, 32>}, {pipeline_mode = #tpu.pipeline_mode<synchronous>, transform_indices = @transform_13, window_bounds = array<i64: 1, 32>}, {pipeline_mode = #tpu.pipeline_mode<synchronous>, transform_indices = @transform_14, window_bounds = array<i64: 1, 32>}, {pipeline_mode = #tpu.pipeline_mode<synchronous>, transform_indices = @transform_15, window_bounds = array<i64: 1, 32>}, {pipeline_mode = #tpu.pipeline_mode<synchronous>, transform_indices = @transform_16, window_bounds = array<i64: 1, 32>}, {pipeline_mode = #tpu.pipeline_mode<synchronous>, transform_indices = @transform_17, window_bounds = array<i64: 1, 32>}, {pipeline_mode = #tpu.pipeline_mode<synchronous>, transform_indices = @transform_18, window_bounds = array<i64: 32, 128>}, {pipeline_mode = #tpu.pipeline_mode<synchronous>, transform_indices = @transform_19, window_bounds = array<i64: 1, 128>}, {pipeline_mode = #tpu.pipeline_mode<synchronous>, transform_indices = @transform_20, window_bounds = array<i64: 64, 32>}, {pipeline_mode = #tpu.pipeline_mode<synchronous>, transform_indices = @transform_21, window_bounds = array<i64: 1, 32>}, {transform_indices = @transform_22, window_bounds = array<i64: 1, 2, 32>}]} {
    %c0 = arith.constant 0 : index
    %c0_0 = arith.constant 0 : index
    %c0_1 = arith.constant 0 : index
    %0 = vector.load %arg1[%c0, %c0_0, %c0_1] : memref<1x2x32xf32, #tpu.memory_space<vmem>>, vector<1x2x32xf32>
    %1 = vector.shape_cast %0 : vector<1x2x32xf32> to vector<2x32xf32>
    %c0_2 = arith.constant 0 : index
    %c0_3 = arith.constant 0 : index
    %c0_4 = arith.constant 0 : index
    %2 = vector.load %arg2[%c0_2, %c0_3, %c0_4] : memref<1x2x32xf32, #tpu.memory_space<vmem>>, vector<1x2x32xf32>
    %3 = vector.shape_cast %2 : vector<1x2x32xf32> to vector<2x32xf32>
    %c0_5 = arith.constant 0 : index
    %c0_6 = arith.constant 0 : index
    %c0_7 = arith.constant 0 : index
    %4 = vector.load %arg3[%c0_5, %c0_6, %c0_7] : memref<1x2x32xf32, #tpu.memory_space<vmem>>, vector<1x2x32xf32>
    %5 = vector.shape_cast %4 : vector<1x2x32xf32> to vector<2x32xf32>
    %c0_8 = arith.constant 0 : index
    %c0_9 = arith.constant 0 : index
    %c0_10 = arith.constant 0 : index
    %6 = vector.load %arg4[%c0_8, %c0_9, %c0_10] : memref<1x1x32xf32, #tpu.memory_space<vmem>>, vector<1x1x32xf32>
    %7 = vector.shape_cast %6 : vector<1x1x32xf32> to vector<1x32xf32>
    %c0_11 = arith.constant 0 : index
    %c0_12 = arith.constant 0 : index
    %c0_13 = arith.constant 0 : index
    %8 = vector.load %arg5[%c0_11, %c0_12, %c0_13] : memref<1x1x32xf32, #tpu.memory_space<vmem>>, vector<1x1x32xf32>
    %9 = vector.shape_cast %8 : vector<1x1x32xf32> to vector<1x32xf32>
    %c0_14 = arith.constant 0 : index
    %c0_15 = arith.constant 0 : index
    %10 = vector.load %arg6[%c0_14, %c0_15] : memref<32x32xf32, #tpu.memory_space<vmem>>, vector<32x32xf32>
    %cst = arith.constant dense<0.000000e+00> : vector<2x32xf32>
    %11 = tpu.matmul %1, %10, %cst {dimension_numbers = #tpu.dot_dimension_numbers<[1], [0], [0], [1], [0, 0, 1, 1], [], []>} : vector<2x32xf32>, vector<32x32xf32>, vector<2x32xf32> -> vector<2x32xf32>
    %12 = vector.broadcast %9 : vector<1x32xf32> to vector<2x32xf32>
    %13 = arith.mulf %1, %12 : vector<2x32xf32>
    %14 = vector.broadcast %7 : vector<1x32xf32> to vector<2x32xf32>
    %15 = arith.mulf %11, %14 : vector<2x32xf32>
    %16 = arith.addf %13, %15 : vector<2x32xf32>
    %cst_16 = arith.constant dense<0.000000e+00> : vector<2x32xf32>
    %17 = tpu.matmul %3, %10, %cst_16 {dimension_numbers = #tpu.dot_dimension_numbers<[1], [0], [0], [1], [0, 0, 1, 1], [], []>} : vector<2x32xf32>, vector<32x32xf32>, vector<2x32xf32> -> vector<2x32xf32>
    %18 = vector.broadcast %9 : vector<1x32xf32> to vector<2x32xf32>
    %19 = arith.mulf %3, %18 : vector<2x32xf32>
    %20 = vector.broadcast %7 : vector<1x32xf32> to vector<2x32xf32>
    %21 = arith.mulf %17, %20 : vector<2x32xf32>
    %22 = arith.addf %19, %21 : vector<2x32xf32>
    %cst_17 = arith.constant dense<0.000000e+00> : vector<2x32xf32>
    %23 = tpu.matmul %5, %10, %cst_17 {dimension_numbers = #tpu.dot_dimension_numbers<[1], [0], [0], [1], [0, 0, 1, 1], [], []>} : vector<2x32xf32>, vector<32x32xf32>, vector<2x32xf32> -> vector<2x32xf32>
    %24 = vector.broadcast %9 : vector<1x32xf32> to vector<2x32xf32>
    %25 = arith.mulf %5, %24 : vector<2x32xf32>
    %26 = vector.broadcast %7 : vector<1x32xf32> to vector<2x32xf32>
    %27 = arith.mulf %23, %26 : vector<2x32xf32>
    %28 = arith.addf %25, %27 : vector<2x32xf32>
    %c0_18 = arith.constant 0 : index
    %c0_19 = arith.constant 0 : index
    %29 = vector.load %arg15[%c0_18, %c0_19] : memref<1x32xf32, #tpu.memory_space<vmem>>, vector<1x32xf32>
    %c0_20 = arith.constant 0 : index
    %c0_21 = arith.constant 0 : index
    %30 = vector.load %arg16[%c0_20, %c0_21] : memref<1x32xf32, #tpu.memory_space<vmem>>, vector<1x32xf32>
    %cst_22 = arith.constant dense<0.000000e+00> : vector<2xf32>
    %31 = vector.multi_reduction <add>, %16, %cst_22 [1] : vector<2x32xf32> to vector<2xf32>
    %32 = vector.shape_cast %31 : vector<2xf32> to vector<2x1xf32>
    %cst_23 = arith.constant 3.200000e+01 : f32
    %33 = vector.broadcast %cst_23 : f32 to vector<2x1xf32>
    %34 = arith.divf %32, %33 : vector<2x1xf32>
    %35 = vector.broadcast %34 : vector<2x1xf32> to vector<2x32xf32>
    %36 = arith.subf %16, %35 : vector<2x32xf32>
    %37 = arith.mulf %36, %36 : vector<2x32xf32>
    %cst_24 = arith.constant dense<0.000000e+00> : vector<2xf32>
    %38 = vector.multi_reduction <add>, %37, %cst_24 [1] : vector<2x32xf32> to vector<2xf32>
    %39 = vector.shape_cast %38 : vector<2xf32> to vector<2x1xf32>
    %cst_25 = arith.constant 3.200000e+01 : f32
    %40 = vector.broadcast %cst_25 : f32 to vector<2x1xf32>
    %41 = arith.divf %39, %40 : vector<2x1xf32>
    %42 = vector.broadcast %34 : vector<2x1xf32> to vector<2x32xf32>
    %43 = arith.subf %16, %42 : vector<2x32xf32>
    %cst_26 = arith.constant 9.99999974E-6 : f32
    %44 = vector.broadcast %cst_26 : f32 to vector<2x1xf32>
    %45 = arith.addf %41, %44 : vector<2x1xf32>
    %46 = math.rsqrt %45 : vector<2x1xf32>
    %47 = vector.broadcast %46 : vector<2x1xf32> to vector<2x32xf32>
    %48 = arith.mulf %43, %47 : vector<2x32xf32>
    %49 = vector.broadcast %29 : vector<1x32xf32> to vector<2x32xf32>
    %50 = arith.mulf %48, %49 : vector<2x32xf32>
    %51 = vector.broadcast %30 : vector<1x32xf32> to vector<2x32xf32>
    %52 = arith.addf %50, %51 : vector<2x32xf32>
    %53 = arith.truncf %52 : vector<2x32xf32> to vector<2x32xbf16>
    %c0_27 = arith.constant 0 : index
    %c0_28 = arith.constant 0 : index
    %54 = vector.load %arg7[%c0_27, %c0_28] : memref<32x32xbf16, #tpu.memory_space<vmem>>, vector<32x32xbf16>
    %cst_29 = arith.constant dense<0.000000e+00> : vector<2x32xf32>
    %55 = tpu.matmul %53, %54, %cst_29 {dimension_numbers = #tpu.dot_dimension_numbers<[1], [0], [0], [1], [0, 0, 1, 1], [], []>} : vector<2x32xbf16>, vector<32x32xbf16>, vector<2x32xf32> -> vector<2x32xf32>
    %c0_30 = arith.constant 0 : index
    %c0_31 = arith.constant 0 : index
    %56 = vector.load %arg8[%c0_30, %c0_31] : memref<1x32xf32, #tpu.memory_space<vmem>>, vector<1x32xf32>
    %57 = vector.broadcast %56 : vector<1x32xf32> to vector<2x32xf32>
    %58 = arith.addf %55, %57 : vector<2x32xf32>
    %59 = arith.truncf %22 : vector<2x32xf32> to vector<2x32xbf16>
    %c0_32 = arith.constant 0 : index
    %c0_33 = arith.constant 0 : index
    %60 = vector.load %arg9[%c0_32, %c0_33] : memref<32x32xbf16, #tpu.memory_space<vmem>>, vector<32x32xbf16>
    %cst_34 = arith.constant dense<0.000000e+00> : vector<2x32xf32>
    %61 = tpu.matmul %59, %60, %cst_34 {dimension_numbers = #tpu.dot_dimension_numbers<[1], [0], [0], [1], [0, 0, 1, 1], [], []>} : vector<2x32xbf16>, vector<32x32xbf16>, vector<2x32xf32> -> vector<2x32xf32>
    %c0_35 = arith.constant 0 : index
    %c0_36 = arith.constant 0 : index
    %62 = vector.load %arg10[%c0_35, %c0_36] : memref<1x32xf32, #tpu.memory_space<vmem>>, vector<1x32xf32>
    %63 = vector.broadcast %62 : vector<1x32xf32> to vector<2x32xf32>
    %64 = arith.addf %61, %63 : vector<2x32xf32>
    %65 = arith.truncf %28 : vector<2x32xf32> to vector<2x32xbf16>
    %c0_37 = arith.constant 0 : index
    %c0_38 = arith.constant 0 : index
    %66 = vector.load %arg11[%c0_37, %c0_38] : memref<32x32xbf16, #tpu.memory_space<vmem>>, vector<32x32xbf16>
    %cst_39 = arith.constant dense<0.000000e+00> : vector<2x32xf32>
    %67 = tpu.matmul %65, %66, %cst_39 {dimension_numbers = #tpu.dot_dimension_numbers<[1], [0], [0], [1], [0, 0, 1, 1], [], []>} : vector<2x32xbf16>, vector<32x32xbf16>, vector<2x32xf32> -> vector<2x32xf32>
    %c0_40 = arith.constant 0 : index
    %c0_41 = arith.constant 0 : index
    %68 = vector.load %arg12[%c0_40, %c0_41] : memref<1x32xf32, #tpu.memory_space<vmem>>, vector<1x32xf32>
    %69 = vector.broadcast %68 : vector<1x32xf32> to vector<2x32xf32>
    %70 = arith.addf %67, %69 : vector<2x32xf32>
    %71 = vector.extract_strided_slice %58 {offsets = [0, 0], sizes = [2, 8], strides = [1, 1]} : vector<2x32xf32> to vector<2x8xf32>
    %72 = vector.extract_strided_slice %64 {offsets = [0, 0], sizes = [2, 8], strides = [1, 1]} : vector<2x32xf32> to vector<2x8xf32>
    %73 = vector.extract_strided_slice %70 {offsets = [0, 0], sizes = [2, 8], strides = [1, 1]} : vector<2x32xf32> to vector<2x8xf32>
    %cst_42 = arith.constant dense<0.000000e+00> : vector<2x2xf32>
    %74 = tpu.matmul %71, %72, %cst_42 {dimension_numbers = #tpu.dot_dimension_numbers<[1], [1], [0], [0], [0, 0, 1, 0], [], []>} : vector<2x8xf32>, vector<2x8xf32>, vector<2x2xf32> -> vector<2x2xf32>
    %cst_43 = arith.constant 0.353553385 : f32
    %75 = vector.broadcast %cst_43 : f32 to vector<2x2xf32>
    %76 = arith.mulf %74, %75 : vector<2x2xf32>
    %cst_44 = arith.constant dense<0xFF800000> : vector<2xf32>
    %77 = vector.multi_reduction <maximumf>, %76, %cst_44 [1] : vector<2x2xf32> to vector<2xf32>
    %78 = vector.shape_cast %77 : vector<2xf32> to vector<2x1xf32>
    %79 = vector.broadcast %78 : vector<2x1xf32> to vector<2x2xf32>
    %80 = arith.subf %76, %79 : vector<2x2xf32>
    %81 = math.exp %80 : vector<2x2xf32>
    %cst_45 = arith.constant dense<0.000000e+00> : vector<2xf32>
    %82 = vector.multi_reduction <add>, %81, %cst_45 [1] : vector<2x2xf32> to vector<2xf32>
    %83 = vector.shape_cast %82 : vector<2xf32> to vector<2x1xf32>
    %84 = tpu.reciprocal %83 {approx = true} : vector<2x1xf32> -> vector<2x1xf32>
    %85 = vector.broadcast %84 : vector<2x1xf32> to vector<2x2xf32>
    %86 = arith.mulf %81, %85 : vector<2x2xf32>
    %cst_46 = arith.constant dense<0.000000e+00> : vector<2x8xf32>
    %87 = tpu.matmul %86, %73, %cst_46 {dimension_numbers = #tpu.dot_dimension_numbers<[1], [0], [0], [1], [0, 0, 1, 1], [], []>} : vector<2x2xf32>, vector<2x8xf32>, vector<2x8xf32> -> vector<2x8xf32>
    %88 = vector.extract_strided_slice %58 {offsets = [0, 8], sizes = [2, 8], strides = [1, 1]} : vector<2x32xf32> to vector<2x8xf32>
    %89 = vector.extract_strided_slice %64 {offsets = [0, 8], sizes = [2, 8], strides = [1, 1]} : vector<2x32xf32> to vector<2x8xf32>
    %90 = vector.extract_strided_slice %70 {offsets = [0, 8], sizes = [2, 8], strides = [1, 1]} : vector<2x32xf32> to vector<2x8xf32>
    %cst_47 = arith.constant dense<0.000000e+00> : vector<2x2xf32>
    %91 = tpu.matmul %88, %89, %cst_47 {dimension_numbers = #tpu.dot_dimension_numbers<[1], [1], [0], [0], [0, 0, 1, 0], [], []>} : vector<2x8xf32>, vector<2x8xf32>, vector<2x2xf32> -> vector<2x2xf32>
    %cst_48 = arith.constant 0.353553385 : f32
    %92 = vector.broadcast %cst_48 : f32 to vector<2x2xf32>
    %93 = arith.mulf %91, %92 : vector<2x2xf32>
    %cst_49 = arith.constant dense<0xFF800000> : vector<2xf32>
    %94 = vector.multi_reduction <maximumf>, %93, %cst_49 [1] : vector<2x2xf32> to vector<2xf32>
    %95 = vector.shape_cast %94 : vector<2xf32> to vector<2x1xf32>
    %96 = vector.broadcast %95 : vector<2x1xf32> to vector<2x2xf32>
    %97 = arith.subf %93, %96 : vector<2x2xf32>
    %98 = math.exp %97 : vector<2x2xf32>
    %cst_50 = arith.constant dense<0.000000e+00> : vector<2xf32>
    %99 = vector.multi_reduction <add>, %98, %cst_50 [1] : vector<2x2xf32> to vector<2xf32>
    %100 = vector.shape_cast %99 : vector<2xf32> to vector<2x1xf32>
    %101 = tpu.reciprocal %100 {approx = true} : vector<2x1xf32> -> vector<2x1xf32>
    %102 = vector.broadcast %101 : vector<2x1xf32> to vector<2x2xf32>
    %103 = arith.mulf %98, %102 : vector<2x2xf32>
    %cst_51 = arith.constant dense<0.000000e+00> : vector<2x8xf32>
    %104 = tpu.matmul %103, %90, %cst_51 {dimension_numbers = #tpu.dot_dimension_numbers<[1], [0], [0], [1], [0, 0, 1, 1], [], []>} : vector<2x2xf32>, vector<2x8xf32>, vector<2x8xf32> -> vector<2x8xf32>
    %105 = vector.extract_strided_slice %58 {offsets = [0, 16], sizes = [2, 8], strides = [1, 1]} : vector<2x32xf32> to vector<2x8xf32>
    %106 = vector.extract_strided_slice %64 {offsets = [0, 16], sizes = [2, 8], strides = [1, 1]} : vector<2x32xf32> to vector<2x8xf32>
    %107 = vector.extract_strided_slice %70 {offsets = [0, 16], sizes = [2, 8], strides = [1, 1]} : vector<2x32xf32> to vector<2x8xf32>
    %cst_52 = arith.constant dense<0.000000e+00> : vector<2x2xf32>
    %108 = tpu.matmul %105, %106, %cst_52 {dimension_numbers = #tpu.dot_dimension_numbers<[1], [1], [0], [0], [0, 0, 1, 0], [], []>} : vector<2x8xf32>, vector<2x8xf32>, vector<2x2xf32> -> vector<2x2xf32>
    %cst_53 = arith.constant 0.353553385 : f32
    %109 = vector.broadcast %cst_53 : f32 to vector<2x2xf32>
    %110 = arith.mulf %108, %109 : vector<2x2xf32>
    %cst_54 = arith.constant dense<0xFF800000> : vector<2xf32>
    %111 = vector.multi_reduction <maximumf>, %110, %cst_54 [1] : vector<2x2xf32> to vector<2xf32>
    %112 = vector.shape_cast %111 : vector<2xf32> to vector<2x1xf32>
    %113 = vector.broadcast %112 : vector<2x1xf32> to vector<2x2xf32>
    %114 = arith.subf %110, %113 : vector<2x2xf32>
    %115 = math.exp %114 : vector<2x2xf32>
    %cst_55 = arith.constant dense<0.000000e+00> : vector<2xf32>
    %116 = vector.multi_reduction <add>, %115, %cst_55 [1] : vector<2x2xf32> to vector<2xf32>
    %117 = vector.shape_cast %116 : vector<2xf32> to vector<2x1xf32>
    %118 = tpu.reciprocal %117 {approx = true} : vector<2x1xf32> -> vector<2x1xf32>
    %119 = vector.broadcast %118 : vector<2x1xf32> to vector<2x2xf32>
    %120 = arith.mulf %115, %119 : vector<2x2xf32>
    %cst_56 = arith.constant dense<0.000000e+00> : vector<2x8xf32>
    %121 = tpu.matmul %120, %107, %cst_56 {dimension_numbers = #tpu.dot_dimension_numbers<[1], [0], [0], [1], [0, 0, 1, 1], [], []>} : vector<2x2xf32>, vector<2x8xf32>, vector<2x8xf32> -> vector<2x8xf32>
    %122 = vector.extract_strided_slice %58 {offsets = [0, 24], sizes = [2, 8], strides = [1, 1]} : vector<2x32xf32> to vector<2x8xf32>
    %123 = vector.extract_strided_slice %64 {offsets = [0, 24], sizes = [2, 8], strides = [1, 1]} : vector<2x32xf32> to vector<2x8xf32>
    %124 = vector.extract_strided_slice %70 {offsets = [0, 24], sizes = [2, 8], strides = [1, 1]} : vector<2x32xf32> to vector<2x8xf32>
    %cst_57 = arith.constant dense<0.000000e+00> : vector<2x2xf32>
    %125 = tpu.matmul %122, %123, %cst_57 {dimension_numbers = #tpu.dot_dimension_numbers<[1], [1], [0], [0], [0, 0, 1, 0], [], []>} : vector<2x8xf32>, vector<2x8xf32>, vector<2x2xf32> -> vector<2x2xf32>
    %cst_58 = arith.constant 0.353553385 : f32
    %126 = vector.broadcast %cst_58 : f32 to vector<2x2xf32>
    %127 = arith.mulf %125, %126 : vector<2x2xf32>
    %cst_59 = arith.constant dense<0xFF800000> : vector<2xf32>
    %128 = vector.multi_reduction <maximumf>, %127, %cst_59 [1] : vector<2x2xf32> to vector<2xf32>
    %129 = vector.shape_cast %128 : vector<2xf32> to vector<2x1xf32>
    %130 = vector.broadcast %129 : vector<2x1xf32> to vector<2x2xf32>
    %131 = arith.subf %127, %130 : vector<2x2xf32>
    %132 = math.exp %131 : vector<2x2xf32>
    %cst_60 = arith.constant dense<0.000000e+00> : vector<2xf32>
    %133 = vector.multi_reduction <add>, %132, %cst_60 [1] : vector<2x2xf32> to vector<2xf32>
    %134 = vector.shape_cast %133 : vector<2xf32> to vector<2x1xf32>
    %135 = tpu.reciprocal %134 {approx = true} : vector<2x1xf32> -> vector<2x1xf32>
    %136 = vector.broadcast %135 : vector<2x1xf32> to vector<2x2xf32>
    %137 = arith.mulf %132, %136 : vector<2x2xf32>
    %cst_61 = arith.constant dense<0.000000e+00> : vector<2x8xf32>
    %138 = tpu.matmul %137, %124, %cst_61 {dimension_numbers = #tpu.dot_dimension_numbers<[1], [0], [0], [1], [0, 0, 1, 1], [], []>} : vector<2x2xf32>, vector<2x8xf32>, vector<2x8xf32> -> vector<2x8xf32>
    %139 = tpu.concatenate %87, %104, %121, %138 in 1 : vector<2x8xf32>, vector<2x8xf32>, vector<2x8xf32>, vector<2x8xf32> -> vector<2x32xf32>
    %140 = arith.truncf %139 : vector<2x32xf32> to vector<2x32xbf16>
    %c0_62 = arith.constant 0 : index
    %c0_63 = arith.constant 0 : index
    %141 = vector.load %arg13[%c0_62, %c0_63] : memref<32x32xbf16, #tpu.memory_space<vmem>>, vector<32x32xbf16>
    %cst_64 = arith.constant dense<0.000000e+00> : vector<2x32xf32>
    %142 = tpu.matmul %140, %141, %cst_64 {dimension_numbers = #tpu.dot_dimension_numbers<[1], [0], [0], [1], [0, 0, 1, 1], [], []>} : vector<2x32xbf16>, vector<32x32xbf16>, vector<2x32xf32> -> vector<2x32xf32>
    %c0_65 = arith.constant 0 : index
    %c0_66 = arith.constant 0 : index
    %143 = vector.load %arg14[%c0_65, %c0_66] : memref<1x32xf32, #tpu.memory_space<vmem>>, vector<1x32xf32>
    %144 = vector.broadcast %143 : vector<1x32xf32> to vector<2x32xf32>
    %145 = arith.addf %142, %144 : vector<2x32xf32>
    %146 = arith.addf %145, %16 : vector<2x32xf32>
    %c0_67 = arith.constant 0 : index
    %c0_68 = arith.constant 0 : index
    %147 = vector.load %arg17[%c0_67, %c0_68] : memref<1x32xf32, #tpu.memory_space<vmem>>, vector<1x32xf32>
    %c0_69 = arith.constant 0 : index
    %c0_70 = arith.constant 0 : index
    %148 = vector.load %arg18[%c0_69, %c0_70] : memref<1x32xf32, #tpu.memory_space<vmem>>, vector<1x32xf32>
    %cst_71 = arith.constant dense<0.000000e+00> : vector<2xf32>
    %149 = vector.multi_reduction <add>, %146, %cst_71 [1] : vector<2x32xf32> to vector<2xf32>
    %150 = vector.shape_cast %149 : vector<2xf32> to vector<2x1xf32>
    %cst_72 = arith.constant 3.200000e+01 : f32
    %151 = vector.broadcast %cst_72 : f32 to vector<2x1xf32>
    %152 = arith.divf %150, %151 : vector<2x1xf32>
    %153 = vector.broadcast %152 : vector<2x1xf32> to vector<2x32xf32>
    %154 = arith.subf %146, %153 : vector<2x32xf32>
    %155 = arith.mulf %154, %154 : vector<2x32xf32>
    %cst_73 = arith.constant dense<0.000000e+00> : vector<2xf32>
    %156 = vector.multi_reduction <add>, %155, %cst_73 [1] : vector<2x32xf32> to vector<2xf32>
    %157 = vector.shape_cast %156 : vector<2xf32> to vector<2x1xf32>
    %cst_74 = arith.constant 3.200000e+01 : f32
    %158 = vector.broadcast %cst_74 : f32 to vector<2x1xf32>
    %159 = arith.divf %157, %158 : vector<2x1xf32>
    %160 = vector.broadcast %152 : vector<2x1xf32> to vector<2x32xf32>
    %161 = arith.subf %146, %160 : vector<2x32xf32>
    %cst_75 = arith.constant 9.99999974E-6 : f32
    %162 = vector.broadcast %cst_75 : f32 to vector<2x1xf32>
    %163 = arith.addf %159, %162 : vector<2x1xf32>
    %164 = math.rsqrt %163 : vector<2x1xf32>
    %165 = vector.broadcast %164 : vector<2x1xf32> to vector<2x32xf32>
    %166 = arith.mulf %161, %165 : vector<2x32xf32>
    %167 = vector.broadcast %147 : vector<1x32xf32> to vector<2x32xf32>
    %168 = arith.mulf %166, %167 : vector<2x32xf32>
    %169 = vector.broadcast %148 : vector<1x32xf32> to vector<2x32xf32>
    %170 = arith.addf %168, %169 : vector<2x32xf32>
    %171 = arith.truncf %170 : vector<2x32xf32> to vector<2x32xbf16>
    %c0_76 = arith.constant 0 : index
    %c0_77 = arith.constant 0 : index
    %172 = vector.load %arg19[%c0_76, %c0_77] : memref<32x128xbf16, #tpu.memory_space<vmem>>, vector<32x128xbf16>
    %cst_78 = arith.constant dense<0.000000e+00> : vector<2x128xf32>
    %173 = tpu.matmul %171, %172, %cst_78 {dimension_numbers = #tpu.dot_dimension_numbers<[1], [0], [0], [1], [0, 0, 1, 1], [], []>} : vector<2x32xbf16>, vector<32x128xbf16>, vector<2x128xf32> -> vector<2x128xf32>
    %c0_79 = arith.constant 0 : index
    %c0_80 = arith.constant 0 : index
    %174 = vector.load %arg20[%c0_79, %c0_80] : memref<1x128xf32, #tpu.memory_space<vmem>>, vector<1x128xf32>
    %175 = vector.broadcast %174 : vector<1x128xf32> to vector<2x128xf32>
    %176 = arith.addf %173, %175 : vector<2x128xf32>
    %177 = vector.extract_strided_slice %176 {offsets = [0, 0], sizes = [2, 64], strides = [1, 1]} : vector<2x128xf32> to vector<2x64xf32>
    %178 = vector.extract_strided_slice %176 {offsets = [0, 64], sizes = [2, 64], strides = [1, 1]} : vector<2x128xf32> to vector<2x64xf32>
    %179 = arith.negf %178 : vector<2x64xf32>
    %180 = math.exp %179 : vector<2x64xf32>
    %cst_81 = arith.constant 1.000000e+00 : f32
    %181 = vector.broadcast %cst_81 : f32 to vector<2x64xf32>
    %182 = arith.addf %181, %180 : vector<2x64xf32>
    %183 = arith.divf %181, %182 : vector<2x64xf32>
    %184 = arith.mulf %178, %183 : vector<2x64xf32>
    %185 = arith.mulf %177, %184 : vector<2x64xf32>
    %186 = arith.truncf %185 : vector<2x64xf32> to vector<2x64xbf16>
    %c0_82 = arith.constant 0 : index
    %c0_83 = arith.constant 0 : index
    %187 = vector.load %arg21[%c0_82, %c0_83] : memref<64x32xbf16, #tpu.memory_space<vmem>>, vector<64x32xbf16>
    %cst_84 = arith.constant dense<0.000000e+00> : vector<2x32xf32>
    %188 = tpu.matmul %186, %187, %cst_84 {dimension_numbers = #tpu.dot_dimension_numbers<[1], [0], [0], [1], [0, 0, 1, 1], [], []>} : vector<2x64xbf16>, vector<64x32xbf16>, vector<2x32xf32> -> vector<2x32xf32>
    %c0_85 = arith.constant 0 : index
    %c0_86 = arith.constant 0 : index
    %189 = vector.load %arg22[%c0_85, %c0_86] : memref<1x32xf32, #tpu.memory_space<vmem>>, vector<1x32xf32>
    %190 = vector.broadcast %189 : vector<1x32xf32> to vector<2x32xf32>
    %191 = arith.addf %188, %190 : vector<2x32xf32>
    %192 = arith.addf %191, %146 : vector<2x32xf32>
    %c0_87 = arith.constant 0 : index
    %c0_88 = arith.constant 0 : index
    %c0_89 = arith.constant 0 : index
    %193 = vector.load %arg23[%c0_87, %c0_88, %c0_89] : memref<1x2x32xf32, #tpu.memory_space<vmem>>, vector<1x2x32xf32>
    %194 = vector.shape_cast %193 : vector<1x2x32xf32> to vector<2x32xf32>
    %195 = vector.shape_cast %192 : vector<2x32xf32> to vector<1x2x32xf32>
    tpu.vector_store %arg23[%c0_87, %c0_88, %c0_89], %195 {strides = array<i32>} : memref<1x2x32xf32, #tpu.memory_space<vmem>>, vector<1x2x32xf32>,
    return
  }
  func.func @transform_0(%arg0: i32) -> (i32, i32, i32) {
    %c0_i32 = arith.constant 0 : i32
    %c0_i32_0 = arith.constant 0 : i32
    %c0_i32_1 = arith.constant 0 : i32
    return %arg0, %c0_i32, %c0_i32_0 : i32, i32, i32
  }
  func.func @transform_1(%arg0: i32) -> (i32, i32, i32) {
    %c0_i32 = arith.constant 0 : i32
    %c0_i32_0 = arith.constant 0 : i32
    %c0_i32_1 = arith.constant 0 : i32
    return %arg0, %c0_i32, %c0_i32_0 : i32, i32, i32
  }
  func.func @transform_2(%arg0: i32) -> (i32, i32, i32) {
    %c0_i32 = arith.constant 0 : i32
    %c0_i32_0 = arith.constant 0 : i32
    %c0_i32_1 = arith.constant 0 : i32
    return %arg0, %c0_i32, %c0_i32_0 : i32, i32, i32
  }
  func.func @transform_3(%arg0: i32) -> (i32, i32, i32) {
    %c0_i32 = arith.constant 0 : i32
    %c0_i32_0 = arith.constant 0 : i32
    %c0_i32_1 = arith.constant 0 : i32
    return %arg0, %c0_i32, %c0_i32_0 : i32, i32, i32
  }
  func.func @transform_4(%arg0: i32) -> (i32, i32, i32) {
    %c0_i32 = arith.constant 0 : i32
    %c0_i32_0 = arith.constant 0 : i32
    %c0_i32_1 = arith.constant 0 : i32
    return %arg0, %c0_i32, %c0_i32_0 : i32, i32, i32
  }
  func.func @transform_5(%arg0: i32) -> (i32, i32) {
    %c0_i32 = arith.constant 0 : i32
    %c0_i32_0 = arith.constant 0 : i32
    %c0_i32_1 = arith.constant 0 : i32
    return %c0_i32, %c0_i32_0 : i32, i32
  }
  func.func @transform_6(%arg0: i32) -> (i32, i32) {
    %c0_i32 = arith.constant 0 : i32
    %c0_i32_0 = arith.constant 0 : i32
    %c0_i32_1 = arith.constant 0 : i32
    return %c0_i32, %c0_i32_0 : i32, i32
  }
  func.func @transform_7(%arg0: i32) -> (i32, i32) {
    %c0_i32 = arith.constant 0 : i32
    %c0_i32_0 = arith.constant 0 : i32
    %c0_i32_1 = arith.constant 0 : i32
    return %c0_i32, %c0_i32_0 : i32, i32
  }
  func.func @transform_8(%arg0: i32) -> (i32, i32) {
    %c0_i32 = arith.constant 0 : i32
    %c0_i32_0 = arith.constant 0 : i32
    %c0_i32_1 = arith.constant 0 : i32
    return %c0_i32, %c0_i32_0 : i32, i32
  }
  func.func @transform_9(%arg0: i32) -> (i32, i32) {
    %c0_i32 = arith.constant 0 : i32
    %c0_i32_0 = arith.constant 0 : i32
    %c0_i32_1 = arith.constant 0 : i32
    return %c0_i32, %c0_i32_0 : i32, i32
  }
  func.func @transform_10(%arg0: i32) -> (i32, i32) {
    %c0_i32 = arith.constant 0 : i32
    %c0_i32_0 = arith.constant 0 : i32
    %c0_i32_1 = arith.constant 0 : i32
    return %c0_i32, %c0_i32_0 : i32, i32
  }
  func.func @transform_11(%arg0: i32) -> (i32, i32) {
    %c0_i32 = arith.constant 0 : i32
    %c0_i32_0 = arith.constant 0 : i32
    %c0_i32_1 = arith.constant 0 : i32
    return %c0_i32, %c0_i32_0 : i32, i32
  }
  func.func @transform_12(%arg0: i32) -> (i32, i32) {
    %c0_i32 = arith.constant 0 : i32
    %c0_i32_0 = arith.constant 0 : i32
    %c0_i32_1 = arith.constant 0 : i32
    return %c0_i32, %c0_i32_0 : i32, i32
  }
  func.func @transform_13(%arg0: i32) -> (i32, i32) {
    %c0_i32 = arith.constant 0 : i32
    %c0_i32_0 = arith.constant 0 : i32
    %c0_i32_1 = arith.constant 0 : i32
    return %c0_i32, %c0_i32_0 : i32, i32
  }
  func.func @transform_14(%arg0: i32) -> (i32, i32) {
    %c0_i32 = arith.constant 0 : i32
    %c0_i32_0 = arith.constant 0 : i32
    %c0_i32_1 = arith.constant 0 : i32
    return %c0_i32, %c0_i32_0 : i32, i32
  }
  func.func @transform_15(%arg0: i32) -> (i32, i32) {
    %c0_i32 = arith.constant 0 : i32
    %c0_i32_0 = arith.constant 0 : i32
    %c0_i32_1 = arith.constant 0 : i32
    return %c0_i32, %c0_i32_0 : i32, i32
  }
  func.func @transform_16(%arg0: i32) -> (i32, i32) {
    %c0_i32 = arith.constant 0 : i32
    %c0_i32_0 = arith.constant 0 : i32
    %c0_i32_1 = arith.constant 0 : i32
    return %c0_i32, %c0_i32_0 : i32, i32
  }
  func.func @transform_17(%arg0: i32) -> (i32, i32) {
    %c0_i32 = arith.constant 0 : i32
    %c0_i32_0 = arith.constant 0 : i32
    %c0_i32_1 = arith.constant 0 : i32
    return %c0_i32, %c0_i32_0 : i32, i32
  }
  func.func @transform_18(%arg0: i32) -> (i32, i32) {
    %c0_i32 = arith.constant 0 : i32
    %c0_i32_0 = arith.constant 0 : i32
    %c0_i32_1 = arith.constant 0 : i32
    return %c0_i32, %c0_i32_0 : i32, i32
  }
  func.func @transform_19(%arg0: i32) -> (i32, i32) {
    %c0_i32 = arith.constant 0 : i32
    %c0_i32_0 = arith.constant 0 : i32
    %c0_i32_1 = arith.constant 0 : i32
    return %c0_i32, %c0_i32_0 : i32, i32
  }
  func.func @transform_20(%arg0: i32) -> (i32, i32) {
    %c0_i32 = arith.constant 0 : i32
    %c0_i32_0 = arith.constant 0 : i32
    %c0_i32_1 = arith.constant 0 : i32
    return %c0_i32, %c0_i32_0 : i32, i32
  }
  func.func @transform_21(%arg0: i32) -> (i32, i32) {
    %c0_i32 = arith.constant 0 : i32
    %c0_i32_0 = arith.constant 0 : i32
    %c0_i32_1 = arith.constant 0 : i32
    return %c0_i32, %c0_i32_0 : i32, i32
  }
  func.func @transform_22(%arg0: i32) -> (i32, i32, i32) {
    %c0_i32 = arith.constant 0 : i32
    %c0_i32_0 = arith.constant 0 : i32
    %c0_i32_1 = arith.constant 0 : i32
    return %arg0, %c0_i32, %c0_i32_0 : i32, i32, i32
  }
}

</mosaic_0001>

<llo_original>
// kernel: transformer_forward.9
$region0: #{transformer_forward.9}
  #allocation0 [shape = 'u32[]', space=smem, size = 0x4, offset = 0x4, fixed_abs, tag = 'smem constant byte address 0x4 - core index']
  #allocation1 [shape = 'u32[144,128]{1,0:T(1,128)}', space=vmem, size = 0x12000, scoped, tag = 'internal scratch']
  %s0 = inlined_call_operand.vmem [shape: f32[16,32], index: 0, kind: input, shape index: {}]
  %s1 = inlined_call_operand.vmem [shape: bf16[32,128], index: 1, kind: input, shape index: {}]
  %s2 = inlined_call_operand.vmem [shape: f32[1,128], index: 2, kind: input, shape index: {}]
  %s3 = inlined_call_operand.vmem [shape: f32[16,128], index: 3, kind: output, shape index: {}]
  %s4 = sld [smem:[#allocation0]]
  $region45: #{transformer_forward.9} parent=0
    _
  %s6 = ssub.s32 1, %s4
  %s7 = scalar_select 0, %s6, %s4
  loop: start=0, step=1, limit=4
  $region2: #{transformer_forward.9} parent=0 // loop_pre_header
    _
  $region3: #{transformer_forward.9} parent=0 // loop_header
    %s9 = sphi 0, %s13
    %p10 = scmp.ge.s32.totalorder %s9, 4
    %s19 = sphi 0, %s21
    %s22 = sphi 0, %s19
    %s23 = sphi 0, %s22
    %s39 = sphi 0, %s23
    %s43 = sphi 0, %s43
    %s45 = sphi 0, %s43
    %s46 = sphi 0, %s45
    %s60 = sphi 0, %s46
    %s64 = sphi 0, %s64
    %s66 = sphi 0, %s64
    %s67 = sphi 0, %s66
    %s81 = sphi 0, %s67
    %s87 = sphi 0, %s89
    %s90 = sphi 0, %s87
    %s91 = sphi 0, %s90
    %s107 = sphi 0, %s91
  $region4: #{transformer_forward.9} parent=0 // loop_header_branch
    %12 = sbr.rel (%p10) target = $region8
  $region5: #{transformer_forward.9} parent=0 // loop_body
    %s14 = ssub.s32 %s9, 1
    %s15 = ssub.s32 %s9, 2
    %s16 = sadd.s32 %s9, 1
    %s17 = ssub.s32 %s9, %s16
    %p18 = scmp.eq.s32.totalorder %s17, 0
    %s20 = sadd.s32 %s19, 1
    %s21 = scalar_select %p18, %s19, %s20
    %p24 = pneg %p18
    %p25 = scmp.eq.s32.totalorder %s9, 1
    %p26 = por %p24, %p25
    %p27 = scmp.ne.s32.totalorder %s19, %s22
    %p28 = scmp.eq.s32.totalorder %s9, 0
    %p29 = por %p27, %p28
    %p30 = scmp.ne.s32.totalorder %s19, %s22
    %p31 = scmp.eq.s32.totalorder %s14, 1
    %p32 = por %p30, %p31
    %p33 = scmp.ne.s32.totalorder %s22, %s23
    %p34 = scmp.eq.s32.totalorder %s14, 0
    %p35 = por %p33, %p34
    %p36 = scmp.ne.s32.totalorder %s22, %s23
    %p37 = scmp.eq.s32.totalorder %s15, 1
    %p38 = por %p36, %p37
    %p40 = scmp.ne.s32.totalorder %s23, %s39
    %p41 = scmp.eq.s32.totalorder %s15, 0
    %p42 = por %p40, %p41
    %s44 = sadd.s32 %s43, 1
    %p47 = scmp.eq.s32.totalorder %s9, 1
    %p48 = scmp.ne.s32.totalorder %s43, %s45
    %p49 = scmp.eq.s32.totalorder %s9, 0
    %p50 = por %p48, %p49
    %p51 = scmp.ne.s32.totalorder %s43, %s45
    %p52 = scmp.eq.s32.totalorder %s14, 1
    %p53 = por %p51, %p52
    %p54 = scmp.ne.s32.totalorder %s45, %s46
    %p55 = scmp.eq.s32.totalorder %s14, 0
    %p56 = por %p54, %p55
    %p57 = scmp.ne.s32.totalorder %s45, %s46
    %p58 = scmp.eq.s32.totalorder %s15, 1
    %p59 = por %p57, %p58
    %p61 = scmp.ne.s32.totalorder %s46, %s60
    %p62 = scmp.eq.s32.totalorder %s15, 0
    %p63 = por %p61, %p62
    %s65 = sadd.s32 %s64, 1
    %p68 = scmp.eq.s32.totalorder %s9, 1
    %p69 = scmp.ne.s32.totalorder %s64, %s66
    %p70 = scmp.eq.s32.totalorder %s9, 0
    %p71 = por %p69, %p70
    %p72 = scmp.ne.s32.totalorder %s64, %s66
    %p73 = scmp.eq.s32.totalorder %s14, 1
    %p74 = por %p72, %p73
    %p75 = scmp.ne.s32.totalorder %s66, %s67
    %p76 = scmp.eq.s32.totalorder %s14, 0
    %p77 = por %p75, %p76
    %p78 = scmp.ne.s32.totalorder %s66, %s67
    %p79 = scmp.eq.s32.totalorder %s15, 1
    %p80 = por %p78, %p79
    %p82 = scmp.ne.s32.totalorder %s67, %s81
    %p83 = scmp.eq.s32.totalorder %s15, 0
    %p84 = por %p82, %p83
    %s85 = ssub.s32 %s9, %s16
    %p86 = scmp.eq.s32.totalorder %s85, 0
    %s88 = sadd.s32 %s87, 1
    %s89 = scalar_select %p86, %s87, %s88
    %p92 = pneg %p86
    %p93 = scmp.eq.s32.totalorder %s9, 1
    %p94 = por %p92, %p93
    %p95 = scmp.ne.s32.totalorder %s87, %s90
    %p96 = scmp.eq.s32.totalorder %s9, 0
    %p97 = por %p95, %p96
    %p98 = scmp.ne.s32.totalorder %s87, %s90
    %p99 = scmp.eq.s32.totalorder %s14, 1
    %p100 = por %p98, %p99
    %p101 = scmp.ne.s32.totalorder %s90, %s91
    %p102 = scmp.eq.s32.totalorder %s14, 0
    %p103 = por %p101, %p102
    %p104 = scmp.ne.s32.totalorder %s90, %s91
    %p105 = scmp.eq.s32.totalorder %s15, 1
    %p106 = por %p104, %p105
    %p108 = scmp.ne.s32.totalorder %s91, %s107
    %p109 = scmp.eq.s32.totalorder %s15, 0
    %p110 = por %p108, %p109
    %p111 = scmp.le.s32.totalorder 1, %s9
    %p112 = scmp.lt.s32.totalorder %s9, 3
    %p113 = pnand %p111, %p112
    %p114 = pneg %p113
    // Predicated region
    $region9: #{transformer_forward.9} parent=5 // pred_check
      _
    $region10: #{transformer_forward.9} parent=5 // pred_check_branch
      %116 = sbr.rel (%p113) target = $region12
    $region11: #{transformer_forward.9} parent=5 // pred_region
      %s117 = ssub.s32 %s9, 1
      // Predicated region
      $region13: #{transformer_forward.9} parent=11 // pred_check
        %p118 = pneg %p56
      $region14: #{transformer_forward.9} parent=11 // pred_check_branch
        %120 = sbr.rel (%p118) target = $region16
      $region15: #{transformer_forward.9} parent=11 // pred_region
        _
      $region16: #{transformer_forward.9} parent=11 // pred_fallthru
        _
      // Predicated region
      $region17: #{transformer_forward.9} parent=11 // pred_check
        %p121 = pneg %p77
      $region18: #{transformer_forward.9} parent=11 // pred_check_branch
        %123 = sbr.rel (%p121) target = $region20
      $region19: #{transformer_forward.9} parent=11 // pred_region
        _
      $region20: #{transformer_forward.9} parent=11 // pred_fallthru
        _
    $region12: #{transformer_forward.9} parent=5 // pred_fallthru
      _
    %p124 = scmp.lt.s32.totalorder %s9, 2
    // Predicated region
    $region21: #{transformer_forward.9} parent=5 // pred_check
      %p125 = pneg %p124
    $region22: #{transformer_forward.9} parent=5 // pred_check_branch
      %127 = sbr.rel (%p125) target = $region24
    $region23: #{transformer_forward.9} parent=5 // pred_region
      // Predicated region
      $region25: #{transformer_forward.9} parent=23 // pred_check
        %p128 = pneg %p29
      $region26: #{transformer_forward.9} parent=23 // pred_check_branch
        %130 = sbr.rel (%p128) target = $region28
      $region27: #{transformer_forward.9} parent=23 // pred_region
        %p131 = scmp.lt.s32.totalorder %s9, 1
        %s132 = scalar_select %p131, %s9, 1
        %s133 = smul.addr %s132, 8
        %s134 = scalar_lea.vmem %s0, %s133
      $region28: #{transformer_forward.9} parent=23 // pred_fallthru
        _
    $region24: #{transformer_forward.9} parent=5 // pred_fallthru
      _
    %p135 = scmp.le.s32.totalorder 1, %s9
    %p136 = scmp.lt.s32.totalorder %s9, 3
    %p137 = pnand %p135, %p136
    %p138 = pneg %p137
    // Predicated region
    $region29: #{transformer_forward.9} parent=5 // pred_check
      _
    $region30: #{transformer_forward.9} parent=5 // pred_check_branch
      %140 = sbr.rel (%p137) target = $region32
    $region31: #{transformer_forward.9} parent=5 // pred_region
      %s141 = ssub.s32 %s9, 1
      %p142 = scmp.lt.s32.totalorder %s14, 1
      %s143 = scalar_select %p142, %s14, 1
      %s144 = smul.addr %s143, 8
      %s145 = scalar_lea.vmem %s0, %s144
      %p146 = pneg %p35
      %p147 = pneg %p32
      %p148 = pneg %p56
      %p149 = pneg %p53
      %p150 = pneg %p77
      %p151 = pneg %p74
      %p152 = pneg %p103
      %p153 = pneg %p100
      %p154 = scmp.lt.s32.totalorder %s14, 1
      %s155 = scalar_select %p154, %s14, 1
      %s156 = smul.addr %s155, 8
      %s157 = scalar_lea.vmem %s3, %s156
      %p158 = scmp.lt.s32.totalorder %s14, 1
      %s159 = scalar_select %p158, %s14, 1
      %s160 = smul.addr %s159, 8
      %s161 = scalar_lea.vmem %s0, %s160
      %p162 = scmp.lt.s32.totalorder %s14, 1
      %s163 = scalar_select %p162, %s14, 1
      %s164 = smul.addr %s163, 8
      %s165 = scalar_lea.vmem %s3, %s164
      %v167 = vld [vmem:[%s161] sm:$0xff]
      %v168 = vpack.c.bf16 %v167, %v167
      %v169 = vld [vmem:[%s1] sm:$0xf]
      %v170 = vld [vmem:[%s1 + $0x4] sm:$0xf]
      %v171 = vld [vmem:[%s1 + $0x8] sm:$0xf]
      %v172 = vld [vmem:[%s1 + $0xc] sm:$0xf]
      %v173 = vld [vmem:[%s2] sm:$0x1]
      %v175 = vlaneseq
      %v176 = vshrl.u32 %v175, 7
      %v177 = vsub.s32 0, %v176
      %v178 = vrot.slane %v173, %v177
      %v184 = vunpack.c.l.b16 %v169
      %v185 = vunpack.c.l.b16 %v170
      %v186 = vunpack.c.l.b16 %v171
      %v187 = vunpack.c.l.b16 %v172
      %v188 = vpack.c.b16 %v185, %v184
      %v189 = vpack.c.b16 %v187, %v186
      %vm192 = vcmask 261120
      %v194 = vsel %vm192, %v168, 0
      %196 = vmatprep.subr.bf16.mxu0 0
      %197 = vmatpush1.bf16.msra.mxu0 0
      %198 = vmatprep.subr.bf16.mxu0 0
      %199 = vmatpush1.bf16.msra.mxu0 0
      %200 = vmatprep.subr.bf16.mxu0 0
      %201 = vmatpush1.bf16.msra.mxu0 0
      %202 = vmatprep.subr.bf16.mxu0 0
      %203 = vmatpush1.bf16.msra.mxu0 0
      %204 = vmatprep.subr.bf16.mxu0 0
      %205 = vmatpush1.bf16.msra.mxu0 0
      %206 = vmatprep.subr.bf16.mxu0 0
      %207 = vmatpush1.bf16.msra.mxu0 0
      %208 = vmatprep.subr.bf16.mxu0 0
      %209 = vmatpush1.bf16.msra.mxu0 %v189
      %210 = vmatprep.subr.bf16.mxu0 0
      %211 = vmatpush1.bf16.msra.mxu0 %v188
      %212 = vmatprep.subr.bf16.mxu0 0
      %213 = vmatpush2.bf16.msra.mxu0 0
      %214 = vmatprep.subr.bf16.mxu0 0
      %215 = vmatpush2.bf16.msra.mxu0 0
      %216 = vmatprep.subr.bf16.mxu0 0
      %217 = vmatpush2.bf16.msra.mxu0 0
      %218 = vmatprep.subr.bf16.mxu0 0
      %219 = vmatpush2.bf16.msra.mxu0 0
      %220 = vmatprep.subr.bf16.mxu0 0
      %221 = vmatpush2.bf16.msra.mxu0 0
      %222 = vmatprep.subr.bf16.mxu0 0
      %223 = vmatpush2.bf16.msra.mxu0 0
      %224 = vmatprep.subr.bf16.mxu0 0
      %225 = vmatpush2.bf16.msra.mxu0 0
      %226 = vmatprep.subr.bf16.mxu0 0
      %227 = vmatpush2.bf16.msra.mxu0 0
      %228 = vmatprep.mubr.bf16.mxu0 0
      %229 = vmatmul.mubr.bf16.gmra.mxu0 %v194
      %v230 = vpop.f32.mrf.mxu0
      %v231 = vadd.f32 %v178, %v230
      %v232 = vpop.f32.mrf.mxu0
      %v233 = vpop.f32.mrf.mxu0
      %v234 = vpop.f32.mrf.mxu0
      %235 = vdwg.mxu0
      %236 = vst [vmem:[%s165] sm:$0xff] %v231
      %p237 = scmp.lt.s32.totalorder %s14, 1
      %s238 = scalar_select %p237, %s14, 1
      %s239 = smul.addr %s238, 8
      %s240 = scalar_lea.vmem %s3, %s239
      // Predicated region
      $region33: #{transformer_forward.9} parent=31 // pred_check
        %p241 = pneg %p100
      $region34: #{transformer_forward.9} parent=31 // pred_check_branch
        %243 = sbr.rel (%p241) target = $region36
      $region35: #{transformer_forward.9} parent=31 // pred_region
        _
      $region36: #{transformer_forward.9} parent=31 // pred_fallthru
        _
    $region32: #{transformer_forward.9} parent=5 // pred_fallthru
      _
    %p244 = scmp.le.s32.totalorder 2, %s9
    // Predicated region
    $region37: #{transformer_forward.9} parent=5 // pred_check
      %p245 = pneg %p244
    $region38: #{transformer_forward.9} parent=5 // pred_check_branch
      %247 = sbr.rel (%p245) target = $region40
    $region39: #{transformer_forward.9} parent=5 // pred_region
      %s248 = ssub.s32 %s9, 2
      // Predicated region
      $region41: #{transformer_forward.9} parent=39 // pred_check
        %p249 = pneg %p106
      $region42: #{transformer_forward.9} parent=39 // pred_check_branch
        %251 = sbr.rel (%p249) target = $region44
      $region43: #{transformer_forward.9} parent=39 // pred_region
        %p252 = scmp.lt.s32.totalorder %s15, 1
        %s253 = scalar_select %p252, %s15, 1
        %s254 = smul.addr %s253, 8
        %s255 = scalar_lea.vmem %s3, %s254
      $region44: #{transformer_forward.9} parent=39 // pred_fallthru
        _
    $region40: #{transformer_forward.9} parent=5 // pred_fallthru
      _
  $region6: #{transformer_forward.9} parent=0 // loop_footer
    %s13 = sadd.s32 1, %s9
  $region7: #{transformer_forward.9} parent=0 // loop_footer_branch
    %8 = sbr.rel target = $region3
  $region8: #{transformer_forward.9} parent=0 // loop_exit
    _

// kernel: transformer_forward.5
$region0: #{transformer_forward.5}
  #allocation0 [shape = 'u32[]', space=smem, size = 0x4, offset = 0x4, fixed_abs, tag = 'smem constant byte address 0x4 - core index']
  #allocation1 [shape = 'u32[144,128]{1,0:T(1,128)}', space=vmem, size = 0x12000, scoped, tag = 'internal scratch']
  %s0 = inlined_call_operand.vmem [shape: f32[8,2,32], index: 0, kind: input, shape index: {}, may-alias: {0,1,2}]
  %s1 = inlined_call_operand.vmem [shape: f32[8,2,32], index: 1, kind: input, shape index: {}, may-alias: {0,1,2}]
  %s2 = inlined_call_operand.vmem [shape: f32[8,2,32], index: 2, kind: input, shape index: {}, may-alias: {0,1,2}]
  %s3 = inlined_call_operand.vmem [shape: f32[8,1,32], index: 3, kind: input, shape index: {}]
  %s4 = inlined_call_operand.vmem [shape: f32[8,1,32], index: 4, kind: input, shape index: {}]
  %s5 = inlined_call_operand.vmem [shape: f32[32,32], index: 5, kind: input, shape index: {}]
  %s6 = inlined_call_operand.vmem [shape: bf16[32,32], index: 6, kind: input, shape index: {}]
  %s7 = inlined_call_operand.vmem [shape: f32[1,32], index: 7, kind: input, shape index: {}]
  %s8 = inlined_call_operand.vmem [shape: bf16[32,32], index: 8, kind: input, shape index: {}]
  %s9 = inlined_call_operand.vmem [shape: f32[1,32], index: 9, kind: input, shape index: {}]
  %s10 = inlined_call_operand.vmem [shape: bf16[32,32], index: 10, kind: input, shape index: {}]
  %s11 = inlined_call_operand.vmem [shape: f32[1,32], index: 11, kind: input, shape index: {}]
  %s12 = inlined_call_operand.vmem [shape: bf16[32,32], index: 12, kind: input, shape index: {}]
  %s13 = inlined_call_operand.vmem [shape: f32[1,32], index: 13, kind: input, shape index: {}]
  %s14 = inlined_call_operand.vmem [shape: f32[1,32], index: 14, kind: input, shape index: {}]
  %s15 = inlined_call_operand.vmem [shape: f32[1,32], index: 15, kind: input, shape index: {}]
  %s16 = inlined_call_operand.vmem [shape: f32[1,32], index: 16, kind: input, shape index: {}]
  %s17 = inlined_call_operand.vmem [shape: f32[1,32], index: 17, kind: input, shape index: {}]
  %s18 = inlined_call_operand.vmem [shape: bf16[32,128], index: 18, kind: input, shape index: {}]
  %s19 = inlined_call_operand.vmem [shape: f32[1,128], index: 19, kind: input, shape index: {}]
  %s20 = inlined_call_operand.vmem [shape: bf16[64,32], index: 20, kind: input, shape index: {}]
  %s21 = inlined_call_operand.vmem [shape: f32[1,32], index: 21, kind: input, shape index: {}]
  %s22 = inlined_call_operand.vmem [shape: f32[8,2,32], index: 22, kind: output, shape index: {}]
  %s23 = sld [smem:[#allocation0]]
  $region121: #{transformer_forward.5} parent=0
    _
  %s25 = ssub.s32 1, %s23
  %s26 = scalar_select 0, %s25, %s23
  loop: start=0, step=1, limit=10
  $region2: #{transformer_forward.5} parent=0 // loop_pre_header
    _
  $region3: #{transformer_forward.5} parent=0 // loop_header
    %s28 = sphi 0, %s32
    %p29 = scmp.ge.s32.totalorder %s28, 10
    %s38 = sphi 0, %s40
    %s41 = sphi 0, %s38
    %s42 = sphi 0, %s41
    %s58 = sphi 0, %s42
    %s64 = sphi 0, %s66
    %s67 = sphi 0, %s64
    %s68 = sphi 0, %s67
    %s84 = sphi 0, %s68
    %s90 = sphi 0, %s92
    %s93 = sphi 0, %s90
    %s94 = sphi 0, %s93
    %s110 = sphi 0, %s94
    %s116 = sphi 0, %s118
    %s119 = sphi 0, %s116
    %s120 = sphi 0, %s119
    %s136 = sphi 0, %s120
    %s142 = sphi 0, %s144
    %s145 = sphi 0, %s142
    %s146 = sphi 0, %s145
    %s162 = sphi 0, %s146
    %s166 = sphi 0, %s166
    %s168 = sphi 0, %s166
    %s169 = sphi 0, %s168
    %s183 = sphi 0, %s169
    %s187 = sphi 0, %s187
    %s189 = sphi 0, %s187
    %s190 = sphi 0, %s189
    %s204 = sphi 0, %s190
    %s208 = sphi 0, %s208
    %s210 = sphi 0, %s208
    %s211 = sphi 0, %s210
    %s225 = sphi 0, %s211
    %s229 = sphi 0, %s229
    %s231 = sphi 0, %s229
    %s232 = sphi 0, %s231
    %s246 = sphi 0, %s232
    %s250 = sphi 0, %s250
    %s252 = sphi 0, %s250
    %s253 = sphi 0, %s252
    %s267 = sphi 0, %s253
    %s271 = sphi 0, %s271
    %s273 = sphi 0, %s271
    %s274 = sphi 0, %s273
    %s288 = sphi 0, %s274
    %s292 = sphi 0, %s292
    %s294 = sphi 0, %s292
    %s295 = sphi 0, %s294
    %s309 = sphi 0, %s295
    %s313 = sphi 0, %s313
    %s315 = sphi 0, %s313
    %s316 = sphi 0, %s315
    %s330 = sphi 0, %s316
    %s334 = sphi 0, %s334
    %s336 = sphi 0, %s334
    %s337 = sphi 0, %s336
    %s351 = sphi 0, %s337
    %s355 = sphi 0, %s355
    %s357 = sphi 0, %s355
    %s358 = sphi 0, %s357
    %s372 = sphi 0, %s358
    %s376 = sphi 0, %s376
    %s378 = sphi 0, %s376
    %s379 = sphi 0, %s378
    %s393 = sphi 0, %s379
    %s397 = sphi 0, %s397
    %s399 = sphi 0, %s397
    %s400 = sphi 0, %s399
    %s414 = sphi 0, %s400
    %s418 = sphi 0, %s418
    %s420 = sphi 0, %s418
    %s421 = sphi 0, %s420
    %s435 = sphi 0, %s421
    %s439 = sphi 0, %s439
    %s441 = sphi 0, %s439
    %s442 = sphi 0, %s441
    %s456 = sphi 0, %s442
    %s460 = sphi 0, %s460
    %s462 = sphi 0, %s460
    %s463 = sphi 0, %s462
    %s477 = sphi 0, %s463
    %s481 = sphi 0, %s481
    %s483 = sphi 0, %s481
    %s484 = sphi 0, %s483
    %s498 = sphi 0, %s484
    %s502 = sphi 0, %s502
    %s504 = sphi 0, %s502
    %s505 = sphi 0, %s504
    %s519 = sphi 0, %s505
    %s525 = sphi 0, %s527
    %s528 = sphi 0, %s525
    %s529 = sphi 0, %s528
    %s545 = sphi 0, %s529
  $region4: #{transformer_forward.5} parent=0 // loop_header_branch
    %31 = sbr.rel (%p29) target = $region8
  $region5: #{transformer_forward.5} parent=0 // loop_body
    %s33 = ssub.s32 %s28, 1
    %s34 = ssub.s32 %s28, 2
    %s35 = sadd.s32 %s28, 1
    %s36 = ssub.s32 %s28, %s35
    %p37 = scmp.eq.s32.totalorder %s36, 0
    %s39 = sadd.s32 %s38, 1
    %s40 = scalar_select %p37, %s38, %s39
    %p43 = pneg %p37
    %p44 = scmp.eq.s32.totalorder %s28, 7
    %p45 = por %p43, %p44
    %p46 = scmp.ne.s32.totalorder %s38, %s41
    %p47 = scmp.eq.s32.totalorder %s28, 0
    %p48 = por %p46, %p47
    %p49 = scmp.ne.s32.totalorder %s38, %s41
    %p50 = scmp.eq.s32.totalorder %s33, 7
    %p51 = por %p49, %p50
    %p52 = scmp.ne.s32.totalorder %s41, %s42
    %p53 = scmp.eq.s32.totalorder %s33, 0
    %p54 = por %p52, %p53
    %p55 = scmp.ne.s32.totalorder %s41, %s42
    %p56 = scmp.eq.s32.totalorder %s34, 7
    %p57 = por %p55, %p56
    %p59 = scmp.ne.s32.totalorder %s42, %s58
    %p60 = scmp.eq.s32.totalorder %s34, 0
    %p61 = por %p59, %p60
    %s62 = ssub.s32 %s28, %s35
    %p63 = scmp.eq.s32.totalorder %s62, 0
    %s65 = sadd.s32 %s64, 1
    %s66 = scalar_select %p63, %s64, %s65
    %p69 = pneg %p63
    %p70 = scmp.eq.s32.totalorder %s28, 7
    %p71 = por %p69, %p70
    %p72 = scmp.ne.s32.totalorder %s64, %s67
    %p73 = scmp.eq.s32.totalorder %s28, 0
    %p74 = por %p72, %p73
    %p75 = scmp.ne.s32.totalorder %s64, %s67
    %p76 = scmp.eq.s32.totalorder %s33, 7
    %p77 = por %p75, %p76
    %p78 = scmp.ne.s32.totalorder %s67, %s68
    %p79 = scmp.eq.s32.totalorder %s33, 0
    %p80 = por %p78, %p79
    %p81 = scmp.ne.s32.totalorder %s67, %s68
    %p82 = scmp.eq.s32.totalorder %s34, 7
    %p83 = por %p81, %p82
    %p85 = scmp.ne.s32.totalorder %s68, %s84
    %p86 = scmp.eq.s32.totalorder %s34, 0
    %p87 = por %p85, %p86
    %s88 = ssub.s32 %s28, %s35
    %p89 = scmp.eq.s32.totalorder %s88, 0
    %s91 = sadd.s32 %s90, 1
    %s92 = scalar_select %p89, %s90, %s91
    %p95 = pneg %p89
    %p96 = scmp.eq.s32.totalorder %s28, 7
    %p97 = por %p95, %p96
    %p98 = scmp.ne.s32.totalorder %s90, %s93
    %p99 = scmp.eq.s32.totalorder %s28, 0
    %p100 = por %p98, %p99
    %p101 = scmp.ne.s32.totalorder %s90, %s93
    %p102 = scmp.eq.s32.totalorder %s33, 7
    %p103 = por %p101, %p102
    %p104 = scmp.ne.s32.totalorder %s93, %s94
    %p105 = scmp.eq.s32.totalorder %s33, 0
    %p106 = por %p104, %p105
    %p107 = scmp.ne.s32.totalorder %s93, %s94
    %p108 = scmp.eq.s32.totalorder %s34, 7
    %p109 = por %p107, %p108
    %p111 = scmp.ne.s32.totalorder %s94, %s110
    %p112 = scmp.eq.s32.totalorder %s34, 0
    %p113 = por %p111, %p112
    %s114 = ssub.s32 %s28, %s35
    %p115 = scmp.eq.s32.totalorder %s114, 0
    %s117 = sadd.s32 %s116, 1
    %s118 = scalar_select %p115, %s116, %s117
    %p121 = pneg %p115
    %p122 = scmp.eq.s32.totalorder %s28, 7
    %p123 = por %p121, %p122
    %p124 = scmp.ne.s32.totalorder %s116, %s119
    %p125 = scmp.eq.s32.totalorder %s28, 0
    %p126 = por %p124, %p125
    %p127 = scmp.ne.s32.totalorder %s116, %s119
    %p128 = scmp.eq.s32.totalorder %s33, 7
    %p129 = por %p127, %p128
    %p130 = scmp.ne.s32.totalorder %s119, %s120
    %p131 = scmp.eq.s32.totalorder %s33, 0
    %p132 = por %p130, %p131
    %p133 = scmp.ne.s32.totalorder %s119, %s120
    %p134 = scmp.eq.s32.totalorder %s34, 7
    %p135 = por %p133, %p134
    %p137 = scmp.ne.s32.totalorder %s120, %s136
    %p138 = scmp.eq.s32.totalorder %s34, 0
    %p139 = por %p137, %p138
    %s140 = ssub.s32 %s28, %s35
    %p141 = scmp.eq.s32.totalorder %s140, 0
    %s143 = sadd.s32 %s142, 1
    %s144 = scalar_select %p141, %s142, %s143
    %p147 = pneg %p141
    %p148 = scmp.eq.s32.totalorder %s28, 7
    %p149 = por %p147, %p148
    %p150 = scmp.ne.s32.totalorder %s142, %s145
    %p151 = scmp.eq.s32.totalorder %s28, 0
    %p152 = por %p150, %p151
    %p153 = scmp.ne.s32.totalorder %s142, %s145
    %p154 = scmp.eq.s32.totalorder %s33, 7
    %p155 = por %p153, %p154
    %p156 = scmp.ne.s32.totalorder %s145, %s146
    %p157 = scmp.eq.s32.totalorder %s33, 0
    %p158 = por %p156, %p157
    %p159 = scmp.ne.s32.totalorder %s145, %s146
    %p160 = scmp.eq.s32.totalorder %s34, 7
    %p161 = por %p159, %p160
    %p163 = scmp.ne.s32.totalorder %s146, %s162
    %p164 = scmp.eq.s32.totalorder %s34, 0
    %p165 = por %p163, %p164
    %s167 = sadd.s32 %s166, 1
    %p170 = scmp.eq.s32.totalorder %s28, 7
    %p171 = scmp.ne.s32.totalorder %s166, %s168
    %p172 = scmp.eq.s32.totalorder %s28, 0
    %p173 = por %p171, %p172
    %p174 = scmp.ne.s32.totalorder %s166, %s168
    %p175 = scmp.eq.s32.totalorder %s33, 7
    %p176 = por %p174, %p175
    %p177 = scmp.ne.s32.totalorder %s168, %s169
    %p178 = scmp.eq.s32.totalorder %s33, 0
    %p179 = por %p177, %p178
    %p180 = scmp.ne.s32.totalorder %s168, %s169
    %p181 = scmp.eq.s32.totalorder %s34, 7
    %p182 = por %p180, %p181
    %p184 = scmp.ne.s32.totalorder %s169, %s183
    %p185 = scmp.eq.s32.totalorder %s34, 0
    %p186 = por %p184, %p185
    %s188 = sadd.s32 %s187, 1
    %p191 = scmp.eq.s32.totalorder %s28, 7
    %p192 = scmp.ne.s32.totalorder %s187, %s189
    %p193 = scmp.eq.s32.totalorder %s28, 0
    %p194 = por %p192, %p193
    %p195 = scmp.ne.s32.totalorder %s187, %s189
    %p196 = scmp.eq.s32.totalorder %s33, 7
    %p197 = por %p195, %p196
    %p198 = scmp.ne.s32.totalorder %s189, %s190
    %p199 = scmp.eq.s32.totalorder %s33, 0
    %p200 = por %p198, %p199
    %p201 = scmp.ne.s32.totalorder %s189, %s190
    %p202 = scmp.eq.s32.totalorder %s34, 7
    %p203 = por %p201, %p202
    %p205 = scmp.ne.s32.totalorder %s190, %s204
    %p206 = scmp.eq.s32.totalorder %s34, 0
    %p207 = por %p205, %p206
    %s209 = sadd.s32 %s208, 1
    %p212 = scmp.eq.s32.totalorder %s28, 7
    %p213 = scmp.ne.s32.totalorder %s208, %s210
    %p214 = scmp.eq.s32.totalorder %s28, 0
    %p215 = por %p213, %p214
    %p216 = scmp.ne.s32.totalorder %s208, %s210
    %p217 = scmp.eq.s32.totalorder %s33, 7
    %p218 = por %p216, %p217
    %p219 = scmp.ne.s32.totalorder %s210, %s211
    %p220 = scmp.eq.s32.totalorder %s33, 0
    %p221 = por %p219, %p220
    %p222 = scmp.ne.s32.totalorder %s210, %s211
    %p223 = scmp.eq.s32.totalorder %s34, 7
    %p224 = por %p222, %p223
    %p226 = scmp.ne.s32.totalorder %s211, %s225
    %p227 = scmp.eq.s32.totalorder %s34, 0
    %p228 = por %p226, %p227
    %s230 = sadd.s32 %s229, 1
    %p233 = scmp.eq.s32.totalorder %s28, 7
    %p234 = scmp.ne.s32.totalorder %s229, %s231
    %p235 = scmp.eq.s32.totalorder %s28, 0
    %p236 = por %p234, %p235
    %p237 = scmp.ne.s32.totalorder %s229, %s231
    %p238 = scmp.eq.s32.totalorder %s33, 7
    %p239 = por %p237, %p238
    %p240 = scmp.ne.s32.totalorder %s231, %s232
    %p241 = scmp.eq.s32.totalorder %s33, 0
    %p242 = por %p240, %p241
    %p243 = scmp.ne.s32.totalorder %s231, %s232
    %p244 = scmp.eq.s32.totalorder %s34, 7
    %p245 = por %p243, %p244
    %p247 = scmp.ne.s32.totalorder %s232, %s246
    %p248 = scmp.eq.s32.totalorder %s34, 0
    %p249 = por %p247, %p248
    %s251 = sadd.s32 %s250, 1
    %p254 = scmp.eq.s32.totalorder %s28, 7
    %p255 = scmp.ne.s32.totalorder %s250, %s252
    %p256 = scmp.eq.s32.totalorder %s28, 0
    %p257 = por %p255, %p256
    %p258 = scmp.ne.s32.totalorder %s250, %s252
    %p259 = scmp.eq.s32.totalorder %s33, 7
    %p260 = por %p258, %p259
    %p261 = scmp.ne.s32.totalorder %s252, %s253
    %p262 = scmp.eq.s32.totalorder %s33, 0
    %p263 = por %p261, %p262
    %p264 = scmp.ne.s32.totalorder %s252, %s253
    %p265 = scmp.eq.s32.totalorder %s34, 7
    %p266 = por %p264, %p265
    %p268 = scmp.ne.s32.totalorder %s253, %s267
    %p269 = scmp.eq.s32.totalorder %s34, 0
    %p270 = por %p268, %p269
    %s272 = sadd.s32 %s271, 1
    %p275 = scmp.eq.s32.totalorder %s28, 7
    %p276 = scmp.ne.s32.totalorder %s271, %s273
    %p277 = scmp.eq.s32.totalorder %s28, 0
    %p278 = por %p276, %p277
    %p279 = scmp.ne.s32.totalorder %s271, %s273
    %p280 = scmp.eq.s32.totalorder %s33, 7
    %p281 = por %p279, %p280
    %p282 = scmp.ne.s32.totalorder %s273, %s274
    %p283 = scmp.eq.s32.totalorder %s33, 0
    %p284 = por %p282, %p283
    %p285 = scmp.ne.s32.totalorder %s273, %s274
    %p286 = scmp.eq.s32.totalorder %s34, 7
    %p287 = por %p285, %p286
    %p289 = scmp.ne.s32.totalorder %s274, %s288
    %p290 = scmp.eq.s32.totalorder %s34, 0
    %p291 = por %p289, %p290
    %s293 = sadd.s32 %s292, 1
    %p296 = scmp.eq.s32.totalorder %s28, 7
    %p297 = scmp.ne.s32.totalorder %s292, %s294
    %p298 = scmp.eq.s32.totalorder %s28, 0
    %p299 = por %p297, %p298
    %p300 = scmp.ne.s32.totalorder %s292, %s294
    %p301 = scmp.eq.s32.totalorder %s33, 7
    %p302 = por %p300, %p301
    %p303 = scmp.ne.s32.totalorder %s294, %s295
    %p304 = scmp.eq.s32.totalorder %s33, 0
    %p305 = por %p303, %p304
    %p306 = scmp.ne.s32.totalorder %s294, %s295
    %p307 = scmp.eq.s32.totalorder %s34, 7
    %p308 = por %p306, %p307
    %p310 = scmp.ne.s32.totalorder %s295, %s309
    %p311 = scmp.eq.s32.totalorder %s34, 0
    %p312 = por %p310, %p311
    %s314 = sadd.s32 %s313, 1
    %p317 = scmp.eq.s32.totalorder %s28, 7
    %p318 = scmp.ne.s32.totalorder %s313, %s315
    %p319 = scmp.eq.s32.totalorder %s28, 0
    %p320 = por %p318, %p319
    %p321 = scmp.ne.s32.totalorder %s313, %s315
    %p322 = scmp.eq.s32.totalorder %s33, 7
    %p323 = por %p321, %p322
    %p324 = scmp.ne.s32.totalorder %s315, %s316
    %p325 = scmp.eq.s32.totalorder %s33, 0
    %p326 = por %p324, %p325
    %p327 = scmp.ne.s32.totalorder %s315, %s316
    %p328 = scmp.eq.s32.totalorder %s34, 7
    %p329 = por %p327, %p328
    %p331 = scmp.ne.s32.totalorder %s316, %s330
    %p332 = scmp.eq.s32.totalorder %s34, 0
    %p333 = por %p331, %p332
    %s335 = sadd.s32 %s334, 1
    %p338 = scmp.eq.s32.totalorder %s28, 7
    %p339 = scmp.ne.s32.totalorder %s334, %s336
    %p340 = scmp.eq.s32.totalorder %s28, 0
    %p341 = por %p339, %p340
    %p342 = scmp.ne.s32.totalorder %s334, %s336
    %p343 = scmp.eq.s32.totalorder %s33, 7
    %p344 = por %p342, %p343
    %p345 = scmp.ne.s32.totalorder %s336, %s337
    %p346 = scmp.eq.s32.totalorder %s33, 0
    %p347 = por %p345, %p346
    %p348 = scmp.ne.s32.totalorder %s336, %s337
    %p349 = scmp.eq.s32.totalorder %s34, 7
    %p350 = por %p348, %p349
    %p352 = scmp.ne.s32.totalorder %s337, %s351
    %p353 = scmp.eq.s32.totalorder %s34, 0
    %p354 = por %p352, %p353
    %s356 = sadd.s32 %s355, 1
    %p359 = scmp.eq.s32.totalorder %s28, 7
    %p360 = scmp.ne.s32.totalorder %s355, %s357
    %p361 = scmp.eq.s32.totalorder %s28, 0
    %p362 = por %p360, %p361
    %p363 = scmp.ne.s32.totalorder %s355, %s357
    %p364 = scmp.eq.s32.totalorder %s33, 7
    %p365 = por %p363, %p364
    %p366 = scmp.ne.s32.totalorder %s357, %s358
    %p367 = scmp.eq.s32.totalorder %s33, 0
    %p368 = por %p366, %p367
    %p369 = scmp.ne.s32.totalorder %s357, %s358
    %p370 = scmp.eq.s32.totalorder %s34, 7
    %p371 = por %p369, %p370
    %p373 = scmp.ne.s32.totalorder %s358, %s372
    %p374 = scmp.eq.s32.totalorder %s34, 0
    %p375 = por %p373, %p374
    %s377 = sadd.s32 %s376, 1
    %p380 = scmp.eq.s32.totalorder %s28, 7
    %p381 = scmp.ne.s32.totalorder %s376, %s378
    %p382 = scmp.eq.s32.totalorder %s28, 0
    %p383 = por %p381, %p382
    %p384 = scmp.ne.s32.totalorder %s376, %s378
    %p385 = scmp.eq.s32.totalorder %s33, 7
    %p386 = por %p384, %p385
    %p387 = scmp.ne.s32.totalorder %s378, %s379
    %p388 = scmp.eq.s32.totalorder %s33, 0
    %p389 = por %p387, %p388
    %p390 = scmp.ne.s32.totalorder %s378, %s379
    %p391 = scmp.eq.s32.totalorder %s34, 7
    %p392 = por %p390, %p391
    %p394 = scmp.ne.s32.totalorder %s379, %s393
    %p395 = scmp.eq.s32.totalorder %s34, 0
    %p396 = por %p394, %p395
    %s398 = sadd.s32 %s397, 1
    %p401 = scmp.eq.s32.totalorder %s28, 7
    %p402 = scmp.ne.s32.totalorder %s397, %s399
    %p403 = scmp.eq.s32.totalorder %s28, 0
    %p404 = por %p402, %p403
    %p405 = scmp.ne.s32.totalorder %s397, %s399
    %p406 = scmp.eq.s32.totalorder %s33, 7
    %p407 = por %p405, %p406
    %p408 = scmp.ne.s32.totalorder %s399, %s400
    %p409 = scmp.eq.s32.totalorder %s33, 0
    %p410 = por %p408, %p409
    %p411 = scmp.ne.s32.totalorder %s399, %s400
    %p412 = scmp.eq.s32.totalorder %s34, 7
    %p413 = por %p411, %p412
    %p415 = scmp.ne.s32.totalorder %s400, %s414
    %p416 = scmp.eq.s32.totalorder %s34, 0
    %p417 = por %p415, %p416
    %s419 = sadd.s32 %s418, 1
    %p422 = scmp.eq.s32.totalorder %s28, 7
    %p423 = scmp.ne.s32.totalorder %s418, %s420
    %p424 = scmp.eq.s32.totalorder %s28, 0
    %p425 = por %p423, %p424
    %p426 = scmp.ne.s32.totalorder %s418, %s420
    %p427 = scmp.eq.s32.totalorder %s33, 7
    %p428 = por %p426, %p427
    %p429 = scmp.ne.s32.totalorder %s420, %s421
    %p430 = scmp.eq.s32.totalorder %s33, 0
    %p431 = por %p429, %p430
    %p432 = scmp.ne.s32.totalorder %s420, %s421
    %p433 = scmp.eq.s32.totalorder %s34, 7
    %p434 = por %p432, %p433
    %p436 = scmp.ne.s32.totalorder %s421, %s435
    %p437 = scmp.eq.s32.totalorder %s34, 0
    %p438 = por %p436, %p437
    %s440 = sadd.s32 %s439, 1
    %p443 = scmp.eq.s32.totalorder %s28, 7
    %p444 = scmp.ne.s32.totalorder %s439, %s441
    %p445 = scmp.eq.s32.totalorder %s28, 0
    %p446 = por %p444, %p445
    %p447 = scmp.ne.s32.totalorder %s439, %s441
    %p448 = scmp.eq.s32.totalorder %s33, 7
    %p449 = por %p447, %p448
    %p450 = scmp.ne.s32.totalorder %s441, %s442
    %p451 = scmp.eq.s32.totalorder %s33, 0
    %p452 = por %p450, %p451
    %p453 = scmp.ne.s32.totalorder %s441, %s442
    %p454 = scmp.eq.s32.totalorder %s34, 7
    %p455 = por %p453, %p454
    %p457 = scmp.ne.s32.totalorder %s442, %s456
    %p458 = scmp.eq.s32.totalorder %s34, 0
    %p459 = por %p457, %p458
    %s461 = sadd.s32 %s460, 1
    %p464 = scmp.eq.s32.totalorder %s28, 7
    %p465 = scmp.ne.s32.totalorder %s460, %s462
    %p466 = scmp.eq.s32.totalorder %s28, 0
    %p467 = por %p465, %p466
    %p468 = scmp.ne.s32.totalorder %s460, %s462
    %p469 = scmp.eq.s32.totalorder %s33, 7
    %p470 = por %p468, %p469
    %p471 = scmp.ne.s32.totalorder %s462, %s463
    %p472 = scmp.eq.s32.totalorder %s33, 0
    %p473 = por %p471, %p472
    %p474 = scmp.ne.s32.totalorder %s462, %s463
    %p475 = scmp.eq.s32.totalorder %s34, 7
    %p476 = por %p474, %p475
    %p478 = scmp.ne.s32.totalorder %s463, %s477
    %p479 = scmp.eq.s32.totalorder %s34, 0
    %p480 = por %p478, %p479
    %s482 = sadd.s32 %s481, 1
    %p485 = scmp.eq.s32.totalorder %s28, 7
    %p486 = scmp.ne.s32.totalorder %s481, %s483
    %p487 = scmp.eq.s32.totalorder %s28, 0
    %p488 = por %p486, %p487
    %p489 = scmp.ne.s32.totalorder %s481, %s483
    %p490 = scmp.eq.s32.totalorder %s33, 7
    %p491 = por %p489, %p490
    %p492 = scmp.ne.s32.totalorder %s483, %s484
    %p493 = scmp.eq.s32.totalorder %s33, 0
    %p494 = por %p492, %p493
    %p495 = scmp.ne.s32.totalorder %s483, %s484
    %p496 = scmp.eq.s32.totalorder %s34, 7
    %p497 = por %p495, %p496
    %p499 = scmp.ne.s32.totalorder %s484, %s498
    %p500 = scmp.eq.s32.totalorder %s34, 0
    %p501 = por %p499, %p500
    %s503 = sadd.s32 %s502, 1
    %p506 = scmp.eq.s32.totalorder %s28, 7
    %p507 = scmp.ne.s32.totalorder %s502, %s504
    %p508 = scmp.eq.s32.totalorder %s28, 0
    %p509 = por %p507, %p508
    %p510 = scmp.ne.s32.totalorder %s502, %s504
    %p511 = scmp.eq.s32.totalorder %s33, 7
    %p512 = por %p510, %p511
    %p513 = scmp.ne.s32.totalorder %s504, %s505
    %p514 = scmp.eq.s32.totalorder %s33, 0
    %p515 = por %p513, %p514
    %p516 = scmp.ne.s32.totalorder %s504, %s505
    %p517 = scmp.eq.s32.totalorder %s34, 7
    %p518 = por %p516, %p517
    %p520 = scmp.ne.s32.totalorder %s505, %s519
    %p521 = scmp.eq.s32.totalorder %s34, 0
    %p522 = por %p520, %p521
    %s523 = ssub.s32 %s28, %s35
    %p524 = scmp.eq.s32.totalorder %s523, 0
    %s526 = sadd.s32 %s525, 1
    %s527 = scalar_select %p524, %s525, %s526
    %p530 = pneg %p524
    %p531 = scmp.eq.s32.totalorder %s28, 7
    %p532 = por %p530, %p531
    %p533 = scmp.ne.s32.totalorder %s525, %s528
    %p534 = scmp.eq.s32.totalorder %s28, 0
    %p535 = por %p533, %p534
    %p536 = scmp.ne.s32.totalorder %s525, %s528
    %p537 = scmp.eq.s32.totalorder %s33, 7
    %p538 = por %p536, %p537
    %p539 = scmp.ne.s32.totalorder %s528, %s529
    %p540 = scmp.eq.s32.totalorder %s33, 0
    %p541 = por %p539, %p540
    %p542 = scmp.ne.s32.totalorder %s528, %s529
    %p543 = scmp.eq.s32.totalorder %s34, 7
    %p544 = por %p542, %p543
    %p546 = scmp.ne.s32.totalorder %s529, %s545
    %p547 = scmp.eq.s32.totalorder %s34, 0
    %p548 = por %p546, %p547
    %p549 = scmp.le.s32.totalorder 1, %s28
    %p550 = scmp.lt.s32.totalorder %s28, 9
    %p551 = pnand %p549, %p550
    %p552 = pneg %p551
    // Predicated region
    $region9: #{transformer_forward.5} parent=5 // pred_check
      _
    $region10: #{transformer_forward.5} parent=5 // pred_check_branch
      %554 = sbr.rel (%p551) target = $region12
    $region11: #{transformer_forward.5} parent=5 // pred_region
      %s555 = ssub.s32 %s28, 1
      // Predicated region
      $region13: #{transformer_forward.5} parent=11 // pred_check
        %p556 = pneg %p179
      $region14: #{transformer_forward.5} parent=11 // pred_check_branch
        %558 = sbr.rel (%p556) target = $region16
      $region15: #{transformer_forward.5} parent=11 // pred_region
        _
      $region16: #{transformer_forward.5} parent=11 // pred_fallthru
        _
      // Predicated region
      $region17: #{transformer_forward.5} parent=11 // pred_check
        %p559 = pneg %p200
      $region18: #{transformer_forward.5} parent=11 // pred_check_branch
        %561 = sbr.rel (%p559) target = $region20
      $region19: #{transformer_forward.5} parent=11 // pred_region
        _
      $region20: #{transformer_forward.5} parent=11 // pred_fallthru
        _
      // Predicated region
      $region21: #{transformer_forward.5} parent=11 // pred_check
        %p562 = pneg %p221
      $region22: #{transformer_forward.5} parent=11 // pred_check_branch
        %564 = sbr.rel (%p562) target = $region24
      $region23: #{transformer_forward.5} parent=11 // pred_region
        _
      $region24: #{transformer_forward.5} parent=11 // pred_fallthru
        _
      // Predicated region
      $region25: #{transformer_forward.5} parent=11 // pred_check
        %p565 = pneg %p242
      $region26: #{transformer_forward.5} parent=11 // pred_check_branch
        %567 = sbr.rel (%p565) target = $region28
      $region27: #{transformer_forward.5} parent=11 // pred_region
        _
      $region28: #{transformer_forward.5} parent=11 // pred_fallthru
        _
      // Predicated region
      $region29: #{transformer_forward.5} parent=11 // pred_check
        %p568 = pneg %p263
      $region30: #{transformer_forward.5} parent=11 // pred_check_branch
        %570 = sbr.rel (%p568) target = $region32
      $region31: #{transformer_forward.5} parent=11 // pred_region
        _
      $region32: #{transformer_forward.5} parent=11 // pred_fallthru
        _
      // Predicated region
      $region33: #{transformer_forward.5} parent=11 // pred_check
        %p571 = pneg %p284
      $region34: #{transformer_forward.5} parent=11 // pred_check_branch
        %573 = sbr.rel (%p571) target = $region36
      $region35: #{transformer_forward.5} parent=11 // pred_region
        _
      $region36: #{transformer_forward.5} parent=11 // pred_fallthru
        _
      // Predicated region
      $region37: #{transformer_forward.5} parent=11 // pred_check
        %p574 = pneg %p305
      $region38: #{transformer_forward.5} parent=11 // pred_check_branch
        %576 = sbr.rel (%p574) target = $region40
      $region39: #{transformer_forward.5} parent=11 // pred_region
        _
      $region40: #{transformer_forward.5} parent=11 // pred_fallthru
        _
      // Predicated region
      $region41: #{transformer_forward.5} parent=11 // pred_check
        %p577 = pneg %p326
      $region42: #{transformer_forward.5} parent=11 // pred_check_branch
        %579 = sbr.rel (%p577) target = $region44
      $region43: #{transformer_forward.5} parent=11 // pred_region
        _
      $region44: #{transformer_forward.5} parent=11 // pred_fallthru
        _
      // Predicated region
      $region45: #{transformer_forward.5} parent=11 // pred_check
        %p580 = pneg %p347
      $region46: #{transformer_forward.5} parent=11 // pred_check_branch
        %582 = sbr.rel (%p580) target = $region48
      $region47: #{transformer_forward.5} parent=11 // pred_region
        _
      $region48: #{transformer_forward.5} parent=11 // pred_fallthru
        _
      // Predicated region
      $region49: #{transformer_forward.5} parent=11 // pred_check
        %p583 = pneg %p368
      $region50: #{transformer_forward.5} parent=11 // pred_check_branch
        %585 = sbr.rel (%p583) target = $region52
      $region51: #{transformer_forward.5} parent=11 // pred_region
        _
      $region52: #{transformer_forward.5} parent=11 // pred_fallthru
        _
      // Predicated region
      $region53: #{transformer_forward.5} parent=11 // pred_check
        %p586 = pneg %p389
      $region54: #{transformer_forward.5} parent=11 // pred_check_branch
        %588 = sbr.rel (%p586) target = $region56
      $region55: #{transformer_forward.5} parent=11 // pred_region
        _
      $region56: #{transformer_forward.5} parent=11 // pred_fallthru
        _
      // Predicated region
      $region57: #{transformer_forward.5} parent=11 // pred_check
        %p589 = pneg %p410
      $region58: #{transformer_forward.5} parent=11 // pred_check_branch
        %591 = sbr.rel (%p589) target = $region60
      $region59: #{transformer_forward.5} parent=11 // pred_region
        _
      $region60: #{transformer_forward.5} parent=11 // pred_fallthru
        _
      // Predicated region
      $region61: #{transformer_forward.5} parent=11 // pred_check
        %p592 = pneg %p431
      $region62: #{transformer_forward.5} parent=11 // pred_check_branch
        %594 = sbr.rel (%p592) target = $region64
      $region63: #{transformer_forward.5} parent=11 // pred_region
        _
      $region64: #{transformer_forward.5} parent=11 // pred_fallthru
        _
      // Predicated region
      $region65: #{transformer_forward.5} parent=11 // pred_check
        %p595 = pneg %p452
      $region66: #{transformer_forward.5} parent=11 // pred_check_branch
        %597 = sbr.rel (%p595) target = $region68
      $region67: #{transformer_forward.5} parent=11 // pred_region
        _
      $region68: #{transformer_forward.5} parent=11 // pred_fallthru
        _
      // Predicated region
      $region69: #{transformer_forward.5} parent=11 // pred_check
        %p598 = pneg %p473
      $region70: #{transformer_forward.5} parent=11 // pred_check_branch
        %600 = sbr.rel (%p598) target = $region72
      $region71: #{transformer_forward.5} parent=11 // pred_region
        _
      $region72: #{transformer_forward.5} parent=11 // pred_fallthru
        _
      // Predicated region
      $region73: #{transformer_forward.5} parent=11 // pred_check
        %p601 = pneg %p494
      $region74: #{transformer_forward.5} parent=11 // pred_check_branch
        %603 = sbr.rel (%p601) target = $region76
      $region75: #{transformer_forward.5} parent=11 // pred_region
        _
      $region76: #{transformer_forward.5} parent=11 // pred_fallthru
        _
      // Predicated region
      $region77: #{transformer_forward.5} parent=11 // pred_check
        %p604 = pneg %p515
      $region78: #{transformer_forward.5} parent=11 // pred_check_branch
        %606 = sbr.rel (%p604) target = $region80
      $region79: #{transformer_forward.5} parent=11 // pred_region
        _
      $region80: #{transformer_forward.5} parent=11 // pred_fallthru
        _
    $region12: #{transformer_forward.5} parent=5 // pred_fallthru
      _
    %p607 = scmp.lt.s32.totalorder %s28, 8
    // Predicated region
    $region81: #{transformer_forward.5} parent=5 // pred_check
      %p608 = pneg %p607
    $region82: #{transformer_forward.5} parent=5 // pred_check_branch
      %610 = sbr.rel (%p608) target = $region84
    $region83: #{transformer_forward.5} parent=5 // pred_region
      // Predicated region
      $region85: #{transformer_forward.5} parent=83 // pred_check
        %p611 = pneg %p48
      $region86: #{transformer_forward.5} parent=83 // pred_check_branch
        %613 = sbr.rel (%p611) target = $region88
      $region87: #{transformer_forward.5} parent=83 // pred_region
        %p614 = scmp.lt.s32.totalorder %s28, 7
        %s615 = scalar_select %p614, %s28, 7
        %s616 = smul.addr %s615, 2
        %s617 = scalar_lea.vmem %s0, %s616
      $region88: #{transformer_forward.5} parent=83 // pred_fallthru
        _
      // Predicated region
      $region89: #{transformer_forward.5} parent=83 // pred_check
        %p618 = pneg %p74
      $region90: #{transformer_forward.5} parent=83 // pred_check_branch
        %620 = sbr.rel (%p618) target = $region92
      $region91: #{transformer_forward.5} parent=83 // pred_region
        %p621 = scmp.lt.s32.totalorder %s28, 7
        %s622 = scalar_select %p621, %s28, 7
        %s623 = smul.addr %s622, 2
        %s624 = scalar_lea.vmem %s1, %s623
      $region92: #{transformer_forward.5} parent=83 // pred_fallthru
        _
      // Predicated region
      $region93: #{transformer_forward.5} parent=83 // pred_check
        %p625 = pneg %p100
      $region94: #{transformer_forward.5} parent=83 // pred_check_branch
        %627 = sbr.rel (%p625) target = $region96
      $region95: #{transformer_forward.5} parent=83 // pred_region
        %p628 = scmp.lt.s32.totalorder %s28, 7
        %s629 = scalar_select %p628, %s28, 7
        %s630 = smul.addr %s629, 2
        %s631 = scalar_lea.vmem %s2, %s630
      $region96: #{transformer_forward.5} parent=83 // pred_fallthru
        _
      // Predicated region
      $region97: #{transformer_forward.5} parent=83 // pred_check
        %p632 = pneg %p126
      $region98: #{transformer_forward.5} parent=83 // pred_check_branch
        %634 = sbr.rel (%p632) target = $region100
      $region99: #{transformer_forward.5} parent=83 // pred_region
        %p635 = scmp.lt.s32.totalorder %s28, 7
        %s636 = scalar_select %p635, %s28, 7
        %s637 = scalar_lea.vmem %s3, %s636
      $region100: #{transformer_forward.5} parent=83 // pred_fallthru
        _
      // Predicated region
      $region101: #{transformer_forward.5} parent=83 // pred_check
        %p638 = pneg %p152
      $region102: #{transformer_forward.5} parent=83 // pred_check_branch
        %640 = sbr.rel (%p638) target = $region104
      $region103: #{transformer_forward.5} parent=83 // pred_region
        %p641 = scmp.lt.s32.totalorder %s28, 7
        %s642 = scalar_select %p641, %s28, 7
        %s643 = scalar_lea.vmem %s4, %s642
      $region104: #{transformer_forward.5} parent=83 // pred_fallthru
        _
    $region84: #{transformer_forward.5} parent=5 // pred_fallthru
      _
    %p644 = scmp.le.s32.totalorder 1, %s28
    %p645 = scmp.lt.s32.totalorder %s28, 9
    %p646 = pnand %p644, %p645
    %p647 = pneg %p646
    // Predicated region
    $region105: #{transformer_forward.5} parent=5 // pred_check
      _
    $region106: #{transformer_forward.5} parent=5 // pred_check_branch
      %649 = sbr.rel (%p646) target = $region108
    $region107: #{transformer_forward.5} parent=5 // pred_region
      %s650 = ssub.s32 %s28, 1
      %p651 = scmp.lt.s32.totalorder %s33, 7
      %s652 = scalar_select %p651, %s33, 7
      %s653 = smul.addr %s652, 2
      %s654 = scalar_lea.vmem %s0, %s653
      %p655 = pneg %p54
      %p656 = pneg %p51
      %p657 = scmp.lt.s32.totalorder %s33, 7
      %s658 = scalar_select %p657, %s33, 7
      %s659 = smul.addr %s658, 2
      %s660 = scalar_lea.vmem %s1, %s659
      %p661 = pneg %p80
      %p662 = pneg %p77
      %p663 = scmp.lt.s32.totalorder %s33, 7
      %s664 = scalar_select %p663, %s33, 7
      %s665 = smul.addr %s664, 2
      %s666 = scalar_lea.vmem %s2, %s665
      %p667 = pneg %p106
      %p668 = pneg %p103
      %p669 = scmp.lt.s32.totalorder %s33, 7
      %s670 = scalar_select %p669, %s33, 7
      %s671 = scalar_lea.vmem %s3, %s670
      %p672 = pneg %p132
      %p673 = pneg %p129
      %p674 = scmp.lt.s32.totalorder %s33, 7
      %s675 = scalar_select %p674, %s33, 7
      %s676 = scalar_lea.vmem %s4, %s675
      %p677 = pneg %p158
      %p678 = pneg %p155
      %p679 = pneg %p179
      %p680 = pneg %p176
      %p681 = pneg %p200
      %p682 = pneg %p197
      %p683 = pneg %p221
      %p684 = pneg %p218
      %p685 = pneg %p242
      %p686 = pneg %p239
      %p687 = pneg %p263
      %p688 = pneg %p260
      %p689 = pneg %p284
      %p690 = pneg %p281
      %p691 = pneg %p305
      %p692 = pneg %p302
      %p693 = pneg %p326
      %p694 = pneg %p323
      %p695 = pneg %p347
      %p696 = pneg %p344
      %p697 = pneg %p368
      %p698 = pneg %p365
      %p699 = pneg %p389
      %p700 = pneg %p386
      %p701 = pneg %p410
      %p702 = pneg %p407
      %p703 = pneg %p431
      %p704 = pneg %p428
      %p705 = pneg %p452
      %p706 = pneg %p449
      %p707 = pneg %p473
      %p708 = pneg %p470
      %p709 = pneg %p494
      %p710 = pneg %p491
      %p711 = pneg %p515
      %p712 = pneg %p512
      %p713 = pneg %p541
      %p714 = pneg %p538
      %p715 = scmp.lt.s32.totalorder %s33, 7
      %s716 = scalar_select %p715, %s33, 7
      %s717 = smul.addr %s716, 2
      %s718 = scalar_lea.vmem %s22, %s717
      %p719 = scmp.lt.s32.totalorder %s33, 7
      %s720 = scalar_select %p719, %s33, 7
      %s721 = smul.addr %s720, 2
      %s722 = scalar_lea.vmem %s0, %s721
      %p723 = scmp.lt.s32.totalorder %s33, 7
      %s724 = scalar_select %p723, %s33, 7
      %s725 = smul.addr %s724, 2
      %s726 = scalar_lea.vmem %s1, %s725
      %p727 = scmp.lt.s32.totalorder %s33, 7
      %s728 = scalar_select %p727, %s33, 7
      %s729 = smul.addr %s728, 2
      %s730 = scalar_lea.vmem %s2, %s729
      %p731 = scmp.lt.s32.totalorder %s33, 7
      %s732 = scalar_select %p731, %s33, 7
      %s733 = scalar_lea.vmem %s3, %s732
      %p734 = scmp.lt.s32.totalorder %s33, 7
      %s735 = scalar_select %p734, %s33, 7
      %s736 = scalar_lea.vmem %s4, %s735
      %p737 = scmp.lt.s32.totalorder %s33, 7
      %s738 = scalar_select %p737, %s33, 7
      %s739 = smul.addr %s738, 2
      %s740 = scalar_lea.vmem %s22, %s739
      %v742 = vld [vmem:[%s722] sm:$0x3]
      %v743 = vld [vmem:[%s726] sm:$0x3]
      %v744 = vld [vmem:[%s730] sm:$0x3]
      %v745 = vld [vmem:[%s733] sm:$0x1]
      %v746 = vld [vmem:[%s736] sm:$0x1]
      %v747 = vld [vmem:[%s5] sm:$0xff]
      %v748 = vld [vmem:[%s5 + $0x8] sm:$0xff]
      %v749 = vld [vmem:[%s5 + $0x10] sm:$0xff]
      %v750 = vld [vmem:[%s5 + $0x18] sm:$0xff]
      %vm751 = vcmask 261120
      %v753 = vsel %vm751, %v742, 0
      %755 = vmatprep.subr.mxu0 0.0
      %756 = vmatpush1.msra.mxu0 0.0
      %757 = vmatprep.subr.mxu0 0.0
      %758 = vmatpush1.msra.mxu0 0.0
      %759 = vmatprep.subr.mxu0 0.0
      %760 = vmatpush1.msra.mxu0 0.0
      %761 = vmatprep.subr.mxu0 0.0
      %762 = vmatpush1.msra.mxu0 0.0
      %763 = vmatprep.subr.mxu0 0.0
      %764 = vmatpush1.msra.mxu0 0.0
      %765 = vmatprep.subr.mxu0 0.0
      %766 = vmatpush1.msra.mxu0 0.0
      %767 = vmatprep.subr.mxu0 0.0
      %768 = vmatpush1.msra.mxu0 0.0
      %769 = vmatprep.subr.mxu0 0.0
      %770 = vmatpush1.msra.mxu0 0.0
      %771 = vmatprep.subr.mxu0 0.0
      %772 = vmatpush1.msra.mxu0 0.0
      %773 = vmatprep.subr.mxu0 0.0
      %774 = vmatpush1.msra.mxu0 0.0
      %775 = vmatprep.subr.mxu0 0.0
      %776 = vmatpush1.msra.mxu0 0.0
      %777 = vmatprep.subr.mxu0 0.0
      %778 = vmatpush1.msra.mxu0 0.0
      %779 = vmatprep.subr.mxu0 0.0
      %780 = vmatpush1.msra.mxu0 %v750
      %781 = vmatprep.subr.mxu0 0.0
      %782 = vmatpush1.msra.mxu0 %v749
      %783 = vmatprep.subr.mxu0 0.0
      %784 = vmatpush1.msra.mxu0 %v748
      %785 = vmatprep.subr.mxu0 0.0
      %786 = vmatpush1.msra.mxu0 %v747
      %787 = vmatprep.subr.mxu0 0.0
      %788 = vmatpush2.msra.mxu0 0.0
      %789 = vmatprep.subr.mxu0 0.0
      %790 = vmatpush2.msra.mxu0 0.0
      %791 = vmatprep.subr.mxu0 0.0
      %792 = vmatpush2.msra.mxu0 0.0
      %793 = vmatprep.subr.mxu0 0.0
      %794 = vmatpush2.msra.mxu0 0.0
      %795 = vmatprep.subr.mxu0 0.0
      %796 = vmatpush2.msra.mxu0 0.0
      %797 = vmatprep.subr.mxu0 0.0
      %798 = vmatpush2.msra.mxu0 0.0
      %799 = vmatprep.subr.mxu0 0.0
      %800 = vmatpush2.msra.mxu0 0.0
      %801 = vmatprep.subr.mxu0 0.0
      %802 = vmatpush2.msra.mxu0 0.0
      %803 = vmatprep.subr.mxu0 0.0
      %804 = vmatpush2.msra.mxu0 0.0
      %805 = vmatprep.subr.mxu0 0.0
      %806 = vmatpush2.msra.mxu0 0.0
      %807 = vmatprep.subr.mxu0 0.0
      %808 = vmatpush2.msra.mxu0 0.0
      %809 = vmatprep.subr.mxu0 0.0
      %810 = vmatpush2.msra.mxu0 0.0
      %811 = vmatprep.subr.mxu0 0.0
      %812 = vmatpush2.msra.mxu0 0.0
      %813 = vmatprep.subr.mxu0 0.0
      %814 = vmatpush2.msra.mxu0 0.0
      %815 = vmatprep.subr.mxu0 0.0
      %816 = vmatpush2.msra.mxu0 0.0
      %817 = vmatprep.subr.mxu0 0.0
      %818 = vmatpush2.msra.mxu0 0.0
      %819 = vmatprep.mubr.f32.mxu0 0.0
      %820 = vmatmul.mubr.f32.gmra.mxu0 %v753
      %v821 = vpop.f32.mrf.mxu0
      %v822 = vadd.f32 0.0, %v821
      %v823 = vpop.f32.mrf.mxu0
      %824 = vdwg.mxu0
      %v826 = vlaneseq
      %v827 = vshrl.u32 %v826, 7
      %v828 = vsub.s32 0, %v827
      %v829 = vrot.slane %v746, %v828
      %v831 = vmul.f32 %v742, %v829
      %v833 = vlaneseq
      %v834 = vshrl.u32 %v833, 7
      %v835 = vsub.s32 0, %v834
      %v836 = vrot.slane %v745, %v835
      %v838 = vmul.f32 %v822, %v836
      %v839 = vadd.f32 %v831, %v838
      %v841 = vsel %vm751, %v743, 0
      %843 = vmatprep.subr.mxu0 0.0
      %844 = vmatpush1.msra.mxu0 0.0
      %845 = vmatprep.subr.mxu0 0.0
      %846 = vmatpush1.msra.mxu0 0.0
      %847 = vmatprep.subr.mxu0 0.0
      %848 = vmatpush1.msra.mxu0 0.0
      %849 = vmatprep.subr.mxu0 0.0
      %850 = vmatpush1.msra.mxu0 0.0
      %851 = vmatprep.subr.mxu0 0.0
      %852 = vmatpush1.msra.mxu0 0.0
      %853 = vmatprep.subr.mxu0 0.0
      %854 = vmatpush1.msra.mxu0 0.0
      %855 = vmatprep.subr.mxu0 0.0
      %856 = vmatpush1.msra.mxu0 0.0
      %857 = vmatprep.subr.mxu0 0.0
      %858 = vmatpush1.msra.mxu0 0.0
      %859 = vmatprep.subr.mxu0 0.0
      %860 = vmatpush1.msra.mxu0 0.0
      %861 = vmatprep.subr.mxu0 0.0
      %862 = vmatpush1.msra.mxu0 0.0
      %863 = vmatprep.subr.mxu0 0.0
      %864 = vmatpush1.msra.mxu0 0.0
      %865 = vmatprep.subr.mxu0 0.0
      %866 = vmatpush1.msra.mxu0 0.0
      %867 = vmatprep.subr.mxu0 0.0
      %868 = vmatpush1.msra.mxu0 %v750
      %869 = vmatprep.subr.mxu0 0.0
      %870 = vmatpush1.msra.mxu0 %v749
      %871 = vmatprep.subr.mxu0 0.0
      %872 = vmatpush1.msra.mxu0 %v748
      %873 = vmatprep.subr.mxu0 0.0
      %874 = vmatpush1.msra.mxu0 %v747
      %875 = vmatprep.subr.mxu0 0.0
      %876 = vmatpush2.msra.mxu0 0.0
      %877 = vmatprep.subr.mxu0 0.0
      %878 = vmatpush2.msra.mxu0 0.0
      %879 = vmatprep.subr.mxu0 0.0
      %880 = vmatpush2.msra.mxu0 0.0
      %881 = vmatprep.subr.mxu0 0.0
      %882 = vmatpush2.msra.mxu0 0.0
      %883 = vmatprep.subr.mxu0 0.0
      %884 = vmatpush2.msra.mxu0 0.0
      %885 = vmatprep.subr.mxu0 0.0
      %886 = vmatpush2.msra.mxu0 0.0
      %887 = vmatprep.subr.mxu0 0.0
      %888 = vmatpush2.msra.mxu0 0.0
      %889 = vmatprep.subr.mxu0 0.0
      %890 = vmatpush2.msra.mxu0 0.0
      %891 = vmatprep.subr.mxu0 0.0
      %892 = vmatpush2.msra.mxu0 0.0
      %893 = vmatprep.subr.mxu0 0.0
      %894 = vmatpush2.msra.mxu0 0.0
      %895 = vmatprep.subr.mxu0 0.0
      %896 = vmatpush2.msra.mxu0 0.0
      %897 = vmatprep.subr.mxu0 0.0
      %898 = vmatpush2.msra.mxu0 0.0
      %899 = vmatprep.subr.mxu0 0.0
      %900 = vmatpush2.msra.mxu0 0.0
      %901 = vmatprep.subr.mxu0 0.0
      %902 = vmatpush2.msra.mxu0 0.0
      %903 = vmatprep.subr.mxu0 0.0
      %904 = vmatpush2.msra.mxu0 0.0
      %905 = vmatprep.subr.mxu0 0.0
      %906 = vmatpush2.msra.mxu0 0.0
      %907 = vmatprep.mubr.f32.mxu0 0.0
      %908 = vmatmul.mubr.f32.gmra.mxu0 %v841
      %v909 = vpop.f32.mrf.mxu0
      %v910 = vadd.f32 0.0, %v909
      %v911 = vpop.f32.mrf.mxu0
      %912 = vdwg.mxu0
      %v913 = vmul.f32 %v743, %v829
      %v914 = vmul.f32 %v910, %v836
      %v915 = vadd.f32 %v913, %v914
      %v917 = vsel %vm751, %v744, 0
      %919 = vmatprep.subr.mxu0 0.0
      %920 = vmatpush1.msra.mxu0 0.0
      %921 = vmatprep.subr.mxu0 0.0
      %922 = vmatpush1.msra.mxu0 0.0
      %923 = vmatprep.subr.mxu0 0.0
      %924 = vmatpush1.msra.mxu0 0.0
      %925 = vmatprep.subr.mxu0 0.0
      %926 = vmatpush1.msra.mxu0 0.0
      %927 = vmatprep.subr.mxu0 0.0
      %928 = vmatpush1.msra.mxu0 0.0
      %929 = vmatprep.subr.mxu0 0.0
      %930 = vmatpush1.msra.mxu0 0.0
      %931 = vmatprep.subr.mxu0 0.0
      %932 = vmatpush1.msra.mxu0 0.0
      %933 = vmatprep.subr.mxu0 0.0
      %934 = vmatpush1.msra.mxu0 0.0
      %935 = vmatprep.subr.mxu0 0.0
      %936 = vmatpush1.msra.mxu0 0.0
      %937 = vmatprep.subr.mxu0 0.0
      %938 = vmatpush1.msra.mxu0 0.0
      %939 = vmatprep.subr.mxu0 0.0
      %940 = vmatpush1.msra.mxu0 0.0
      %941 = vmatprep.subr.mxu0 0.0
      %942 = vmatpush1.msra.mxu0 0.0
      %943 = vmatprep.subr.mxu0 0.0
      %944 = vmatpush1.msra.mxu0 %v750
      %945 = vmatprep.subr.mxu0 0.0
      %946 = vmatpush1.msra.mxu0 %v749
      %947 = vmatprep.subr.mxu0 0.0
      %948 = vmatpush1.msra.mxu0 %v748
      %949 = vmatprep.subr.mxu0 0.0
      %950 = vmatpush1.msra.mxu0 %v747
      %951 = vmatprep.subr.mxu0 0.0
      %952 = vmatpush2.msra.mxu0 0.0
      %953 = vmatprep.subr.mxu0 0.0
      %954 = vmatpush2.msra.mxu0 0.0
      %955 = vmatprep.subr.mxu0 0.0
      %956 = vmatpush2.msra.mxu0 0.0
      %957 = vmatprep.subr.mxu0 0.0
      %958 = vmatpush2.msra.mxu0 0.0
      %959 = vmatprep.subr.mxu0 0.0
      %960 = vmatpush2.msra.mxu0 0.0
      %961 = vmatprep.subr.mxu0 0.0
      %962 = vmatpush2.msra.mxu0 0.0
      %963 = vmatprep.subr.mxu0 0.0
      %964 = vmatpush2.msra.mxu0 0.0
      %965 = vmatprep.subr.mxu0 0.0
      %966 = vmatpush2.msra.mxu0 0.0
      %967 = vmatprep.subr.mxu0 0.0
      %968 = vmatpush2.msra.mxu0 0.0
      %969 = vmatprep.subr.mxu0 0.0
      %970 = vmatpush2.msra.mxu0 0.0
      %971 = vmatprep.subr.mxu0 0.0
      %972 = vmatpush2.msra.mxu0 0.0
      %973 = vmatprep.subr.mxu0 0.0
      %974 = vmatpush2.msra.mxu0 0.0
      %975 = vmatprep.subr.mxu0 0.0
      %976 = vmatpush2.msra.mxu0 0.0
      %977 = vmatprep.subr.mxu0 0.0
      %978 = vmatpush2.msra.mxu0 0.0
      %979 = vmatprep.subr.mxu0 0.0
      %980 = vmatpush2.msra.mxu0 0.0
      %981 = vmatprep.subr.mxu0 0.0
      %982 = vmatpush2.msra.mxu0 0.0
      %983 = vmatprep.mubr.f32.mxu0 0.0
      %984 = vmatmul.mubr.f32.gmra.mxu0 %v917
      %v985 = vpop.f32.mrf.mxu0
      %v986 = vadd.f32 0.0, %v985
      %v987 = vpop.f32.mrf.mxu0
      %988 = vdwg.mxu0
      %v989 = vmul.f32 %v744, %v829
      %v990 = vmul.f32 %v986, %v836
      %v991 = vadd.f32 %v989, %v990
      %v992 = vld [vmem:[%s14] sm:$0x1]
      %v993 = vld [vmem:[%s15] sm:$0x1]
      %vm994 = vcmask 254976
      %v995 = vsel %vm994, %v839, 0.0
      %996 = vadd.xlane.f32.xlu0 %v995
      %v997 = vpop.xlane.xlu0 %996
      %v998 = vrcp.pop 32.0
      %v999 = vmul.f32 %v997, %v998
      %v1000 = vsub.f32 %v839, %v999
      %v1001 = vmul.f32 %v1000, %v1000
      %v1002 = vsel %vm994, %v1001, 0.0
      %1003 = vadd.xlane.f32.xlu0 %v1002
      %v1004 = vpop.xlane.xlu0 %1003
      %v1005 = vmul.f32 %v1004, %v998
      %v1006 = vadd.f32 %v1005, 1e-05
      %v1007 = vrsqrt.pop %v1006
      %v1008 = vmul.f32 %v1000, %v1007
      %v1010 = vlaneseq
      %v1011 = vshrl.u32 %v1010, 7
      %v1012 = vsub.s32 0, %v1011
      %v1013 = vrot.slane %v992, %v1012
      %v1015 = vmul.f32 %v1008, %v1013
      %v1017 = vlaneseq
      %v1018 = vshrl.u32 %v1017, 7
      %v1019 = vsub.s32 0, %v1018
      %v1020 = vrot.slane %v993, %v1019
      %v1022 = vadd.f32 %v1015, %v1020
      %v1023 = vpack.c.bf16 %v1022, %v1022
      %v1024 = vld [vmem:[%s6] sm:$0xf]
      %v1025 = vld [vmem:[%s6 + $0x4] sm:$0xf]
      %v1026 = vld [vmem:[%s6 + $0x8] sm:$0xf]
      %v1027 = vld [vmem:[%s6 + $0xc] sm:$0xf]
      %v1028 = vld [vmem:[%s7] sm:$0x1]
      %v1030 = vlaneseq
      %v1031 = vshrl.u32 %v1030, 7
      %v1032 = vsub.s32 0, %v1031
      %v1033 = vrot.slane %v1028, %v1032
      %v1039 = vunpack.c.l.b16 %v1024
      %v1040 = vunpack.c.l.b16 %v1025
      %v1041 = vunpack.c.l.b16 %v1026
      %v1042 = vunpack.c.l.b16 %v1027
      %v1043 = vpack.c.b16 %v1040, %v1039
      %v1044 = vpack.c.b16 %v1042, %v1041
      %v1048 = vsel %vm751, %v1023, 0
      %1050 = vmatprep.subr.bf16.mxu0 0
      %1051 = vmatpush1.bf16.msra.mxu0 0
      %1052 = vmatprep.subr.bf16.mxu0 0
      %1053 = vmatpush1.bf16.msra.mxu0 0
      %1054 = vmatprep.subr.bf16.mxu0 0
      %1055 = vmatpush1.bf16.msra.mxu0 0
      %1056 = vmatprep.subr.bf16.mxu0 0
      %1057 = vmatpush1.bf16.msra.mxu0 0
      %1058 = vmatprep.subr.bf16.mxu0 0
      %1059 = vmatpush1.bf16.msra.mxu0 0
      %1060 = vmatprep.subr.bf16.mxu0 0
      %1061 = vmatpush1.bf16.msra.mxu0 0
      %1062 = vmatprep.subr.bf16.mxu0 0
      %1063 = vmatpush1.bf16.msra.mxu0 %v1044
      %1064 = vmatprep.subr.bf16.mxu0 0
      %1065 = vmatpush1.bf16.msra.mxu0 %v1043
      %1066 = vmatprep.subr.bf16.mxu0 0
      %1067 = vmatpush2.bf16.msra.mxu0 0
      %1068 = vmatprep.subr.bf16.mxu0 0
      %1069 = vmatpush2.bf16.msra.mxu0 0
      %1070 = vmatprep.subr.bf16.mxu0 0
      %1071 = vmatpush2.bf16.msra.mxu0 0
      %1072 = vmatprep.subr.bf16.mxu0 0
      %1073 = vmatpush2.bf16.msra.mxu0 0
      %1074 = vmatprep.subr.bf16.mxu0 0
      %1075 = vmatpush2.bf16.msra.mxu0 0
      %1076 = vmatprep.subr.bf16.mxu0 0
      %1077 = vmatpush2.bf16.msra.mxu0 0
      %1078 = vmatprep.subr.bf16.mxu0 0
      %1079 = vmatpush2.bf16.msra.mxu0 0
      %1080 = vmatprep.subr.bf16.mxu0 0
      %1081 = vmatpush2.bf16.msra.mxu0 0
      %1082 = vmatprep.mubr.bf16.mxu0 0
      %1083 = vmatmul.mubr.bf16.gmra.mxu0 %v1048
      %v1084 = vpop.f32.mrf.mxu0
      %v1085 = vadd.f32 %v1033, %v1084
      %v1086 = vpop.f32.mrf.mxu0
      %v1087 = vpop.f32.mrf.mxu0
      %v1088 = vpop.f32.mrf.mxu0
      %1089 = vdwg.mxu0
      %v1090 = vpack.c.bf16 %v915, %v915
      %v1091 = vld [vmem:[%s8] sm:$0xf]
      %v1092 = vld [vmem:[%s8 + $0x4] sm:$0xf]
      %v1093 = vld [vmem:[%s8 + $0x8] sm:$0xf]
      %v1094 = vld [vmem:[%s8 + $0xc] sm:$0xf]
      %v1095 = vld [vmem:[%s9] sm:$0x1]
      %v1097 = vlaneseq
      %v1098 = vshrl.u32 %v1097, 7
      %v1099 = vsub.s32 0, %v1098
      %v1100 = vrot.slane %v1095, %v1099
      %v1106 = vunpack.c.l.b16 %v1091
      %v1107 = vunpack.c.l.b16 %v1092
      %v1108 = vunpack.c.l.b16 %v1093
      %v1109 = vunpack.c.l.b16 %v1094
      %v1110 = vpack.c.b16 %v1107, %v1106
      %v1111 = vpack.c.b16 %v1109, %v1108
      %v1115 = vsel %vm751, %v1090, 0
      %1117 = vmatprep.subr.bf16.mxu0 0
      %1118 = vmatpush1.bf16.msra.mxu0 0
      %1119 = vmatprep.subr.bf16.mxu0 0
      %1120 = vmatpush1.bf16.msra.mxu0 0
      %1121 = vmatprep.subr.bf16.mxu0 0
      %1122 = vmatpush1.bf16.msra.mxu0 0
      %1123 = vmatprep.subr.bf16.mxu0 0
      %1124 = vmatpush1.bf16.msra.mxu0 0
      %1125 = vmatprep.subr.bf16.mxu0 0
      %1126 = vmatpush1.bf16.msra.mxu0 0
      %1127 = vmatprep.subr.bf16.mxu0 0
      %1128 = vmatpush1.bf16.msra.mxu0 0
      %1129 = vmatprep.subr.bf16.mxu0 0
      %1130 = vmatpush1.bf16.msra.mxu0 %v1111
      %1131 = vmatprep.subr.bf16.mxu0 0
      %1132 = vmatpush1.bf16.msra.mxu0 %v1110
      %1133 = vmatprep.subr.bf16.mxu0 0
      %1134 = vmatpush2.bf16.msra.mxu0 0
      %1135 = vmatprep.subr.bf16.mxu0 0
      %1136 = vmatpush2.bf16.msra.mxu0 0
      %1137 = vmatprep.subr.bf16.mxu0 0
      %1138 = vmatpush2.bf16.msra.mxu0 0
      %1139 = vmatprep.subr.bf16.mxu0 0
      %1140 = vmatpush2.bf16.msra.mxu0 0
      %1141 = vmatprep.subr.bf16.mxu0 0
      %1142 = vmatpush2.bf16.msra.mxu0 0
      %1143 = vmatprep.subr.bf16.mxu0 0
      %1144 = vmatpush2.bf16.msra.mxu0 0
      %1145 = vmatprep.subr.bf16.mxu0 0
      %1146 = vmatpush2.bf16.msra.mxu0 0
      %1147 = vmatprep.subr.bf16.mxu0 0
      %1148 = vmatpush2.bf16.msra.mxu0 0
      %1149 = vmatprep.mubr.bf16.mxu0 0
      %1150 = vmatmul.mubr.bf16.gmra.mxu0 %v1115
      %v1151 = vpop.f32.mrf.mxu0
      %v1152 = vadd.f32 %v1100, %v1151
      %v1153 = vpop.f32.mrf.mxu0
      %v1154 = vpop.f32.mrf.mxu0
      %v1155 = vpop.f32.mrf.mxu0
      %1156 = vdwg.mxu0
      %v1157 = vpack.c.bf16 %v991, %v991
      %v1158 = vld [vmem:[%s10] sm:$0xf]
      %v1159 = vld [vmem:[%s10 + $0x4] sm:$0xf]
      %v1160 = vld [vmem:[%s10 + $0x8] sm:$0xf]
      %v1161 = vld [vmem:[%s10 + $0xc] sm:$0xf]
      %v1162 = vld [vmem:[%s11] sm:$0x1]
      %v1164 = vlaneseq
      %v1165 = vshrl.u32 %v1164, 7
      %v1166 = vsub.s32 0, %v1165
      %v1167 = vrot.slane %v1162, %v1166
      %v1173 = vunpack.c.l.b16 %v1158
      %v1174 = vunpack.c.l.b16 %v1159
      %v1175 = vunpack.c.l.b16 %v1160
      %v1176 = vunpack.c.l.b16 %v1161
      %v1177 = vpack.c.b16 %v1174, %v1173
      %v1178 = vpack.c.b16 %v1176, %v1175
      %v1182 = vsel %vm751, %v1157, 0
      %1184 = vmatprep.subr.bf16.mxu0 0
      %1185 = vmatpush1.bf16.msra.mxu0 0
      %1186 = vmatprep.subr.bf16.mxu0 0
      %1187 = vmatpush1.bf16.msra.mxu0 0
      %1188 = vmatprep.subr.bf16.mxu0 0
      %1189 = vmatpush1.bf16.msra.mxu0 0
      %1190 = vmatprep.subr.bf16.mxu0 0
      %1191 = vmatpush1.bf16.msra.mxu0 0
      %1192 = vmatprep.subr.bf16.mxu0 0
      %1193 = vmatpush1.bf16.msra.mxu0 0
      %1194 = vmatprep.subr.bf16.mxu0 0
      %1195 = vmatpush1.bf16.msra.mxu0 0
      %1196 = vmatprep.subr.bf16.mxu0 0
      %1197 = vmatpush1.bf16.msra.mxu0 %v1178
      %1198 = vmatprep.subr.bf16.mxu0 0
      %1199 = vmatpush1.bf16.msra.mxu0 %v1177
      %1200 = vmatprep.subr.bf16.mxu0 0
      %1201 = vmatpush2.bf16.msra.mxu0 0
      %1202 = vmatprep.subr.bf16.mxu0 0
      %1203 = vmatpush2.bf16.msra.mxu0 0
      %1204 = vmatprep.subr.bf16.mxu0 0
      %1205 = vmatpush2.bf16.msra.mxu0 0
      %1206 = vmatprep.subr.bf16.mxu0 0
      %1207 = vmatpush2.bf16.msra.mxu0 0
      %1208 = vmatprep.subr.bf16.mxu0 0
      %1209 = vmatpush2.bf16.msra.mxu0 0
      %1210 = vmatprep.subr.bf16.mxu0 0
      %1211 = vmatpush2.bf16.msra.mxu0 0
      %1212 = vmatprep.subr.bf16.mxu0 0
      %1213 = vmatpush2.bf16.msra.mxu0 0
      %1214 = vmatprep.subr.bf16.mxu0 0
      %1215 = vmatpush2.bf16.msra.mxu0 0
      %1216 = vmatprep.mubr.bf16.mxu0 0
      %1217 = vmatmul.mubr.bf16.gmra.mxu0 %v1182
      %v1218 = vpop.f32.mrf.mxu0
      %v1219 = vadd.f32 %v1167, %v1218
      %v1220 = vpop.f32.mrf.mxu0
      %v1221 = vpop.f32.mrf.mxu0
      %v1222 = vpop.f32.mrf.mxu0
      %1223 = vdwg.mxu0
      %vm1224 = vcmask 64512
      %v1226 = vsel %vm1224, %v1085, 0
      %v1229 = vsel %vm1224, %v1152, 0
      %1231 = vmatprep.subr.mxu0 0.0
      %1232 = vmatpush1.xpose.msra.mxu0 0.0
      %1233 = vmatprep.subr.mxu0 0.0
      %1234 = vmatpush1.xpose.msra.mxu0 0.0
      %1235 = vmatprep.subr.mxu0 0.0
      %1236 = vmatpush1.xpose.msra.mxu0 0.0
      %1237 = vmatprep.subr.mxu0 0.0
      %1238 = vmatpush1.xpose.msra.mxu0 0.0
      %1239 = vmatprep.subr.mxu0 0.0
      %1240 = vmatpush1.xpose.msra.mxu0 0.0
      %1241 = vmatprep.subr.mxu0 0.0
      %1242 = vmatpush1.xpose.msra.mxu0 0.0
      %1243 = vmatprep.subr.mxu0 0.0
      %1244 = vmatpush1.xpose.msra.mxu0 0.0
      %1245 = vmatprep.subr.mxu0 0.0
      %1246 = vmatpush1.xpose.msra.mxu0 0.0
      %1247 = vmatprep.subr.mxu0 0.0
      %1248 = vmatpush1.xpose.msra.mxu0 0.0
      %1249 = vmatprep.subr.mxu0 0.0
      %1250 = vmatpush1.xpose.msra.mxu0 0.0
      %1251 = vmatprep.subr.mxu0 0.0
      %1252 = vmatpush1.xpose.msra.mxu0 0.0
      %1253 = vmatprep.subr.mxu0 0.0
      %1254 = vmatpush1.xpose.msra.mxu0 0.0
      %1255 = vmatprep.subr.mxu0 0.0
      %1256 = vmatpush1.xpose.msra.mxu0 0.0
      %1257 = vmatprep.subr.mxu0 0.0
      %1258 = vmatpush1.xpose.msra.mxu0 0.0
      %1259 = vmatprep.subr.mxu0 0.0
      %1260 = vmatpush1.xpose.msra.mxu0 0.0
      %1261 = vmatprep.subr.mxu0 0.0
      %1262 = vmatpush1.xpose.msra.mxu0 %v1229
      %1263 = vmatprep.subr.mxu0 0.0
      %1264 = vmatpush2.xpose.msra.mxu0 0.0
      %1265 = vmatprep.subr.mxu0 0.0
      %1266 = vmatpush2.xpose.msra.mxu0 0.0
      %1267 = vmatprep.subr.mxu0 0.0
      %1268 = vmatpush2.xpose.msra.mxu0 0.0
      %1269 = vmatprep.subr.mxu0 0.0
      %1270 = vmatpush2.xpose.msra.mxu0 0.0
      %1271 = vmatprep.subr.mxu0 0.0
      %1272 = vmatpush2.xpose.msra.mxu0 0.0
      %1273 = vmatprep.subr.mxu0 0.0
      %1274 = vmatpush2.xpose.msra.mxu0 0.0
      %1275 = vmatprep.subr.mxu0 0.0
      %1276 = vmatpush2.xpose.msra.mxu0 0.0
      %1277 = vmatprep.subr.mxu0 0.0
      %1278 = vmatpush2.xpose.msra.mxu0 0.0
      %1279 = vmatprep.subr.mxu0 0.0
      %1280 = vmatpush2.xpose.msra.mxu0 0.0
      %1281 = vmatprep.subr.mxu0 0.0
      %1282 = vmatpush2.xpose.msra.mxu0 0.0
      %1283 = vmatprep.subr.mxu0 0.0
      %1284 = vmatpush2.xpose.msra.mxu0 0.0
      %1285 = vmatprep.subr.mxu0 0.0
      %1286 = vmatpush2.xpose.msra.mxu0 0.0
      %1287 = vmatprep.subr.mxu0 0.0
      %1288 = vmatpush2.xpose.msra.mxu0 0.0
      %1289 = vmatprep.subr.mxu0 0.0
      %1290 = vmatpush2.xpose.msra.mxu0 0.0
      %1291 = vmatprep.subr.mxu0 0.0
      %1292 = vmatpush2.xpose.msra.mxu0 0.0
      %1293 = vmatprep.subr.mxu0 0.0
      %1294 = vmatpush2.xpose.msra.mxu0 0.0
      %1295 = vmatprep.mubr.f32.mxu0 0.0
      %1296 = vmatmul.mubr.f32.gmra.mxu0 %v1226
      %v1297 = vpop.f32.mrf.mxu0
      %v1298 = vadd.f32 0.0, %v1297
      %v1299 = vpop.f32.mrf.mxu0
      %1300 = vdwg.mxu0
      %v1301 = vmul.f32 %v1298, 0.35355338
      %vm1302 = vcmask 9216
      %v1303 = vsel %vm1302, %v1301, -inf
      %1304 = vmax.xlane.f32.xlu0 %v1303
      %v1305 = vpop.xlane.xlu0 %1304
      %v1306 = vsub.f32 %v1301, %v1305
      %v1307 = vmul.f32 %v1306, 1.442695
      %v1308 = vpow.pop %v1307
      %v1309 = vsel %vm1302, %v1308, 0.0
      %1310 = vadd.xlane.f32.xlu0 %v1309
      %v1311 = vpop.xlane.xlu0 %1310
      %v1312 = vrcp.pop %v1311
      %v1313 = vmul.f32 %v1308, %v1312
      %vm1314 = vcmask 15360
      %v1316 = vsel %vm1314, %v1313, 0
      %vm1318 = vcmask 1041408
      %v1320 = vsel %vm1318, %v1219, 0
      %1322 = vmatprep.subr.mxu0 0.0
      %1323 = vmatpush1.msra.mxu0 0.0
      %1324 = vmatprep.subr.mxu0 0.0
      %1325 = vmatpush1.msra.mxu0 0.0
      %1326 = vmatprep.subr.mxu0 0.0
      %1327 = vmatpush1.msra.mxu0 0.0
      %1328 = vmatprep.subr.mxu0 0.0
      %1329 = vmatpush1.msra.mxu0 0.0
      %1330 = vmatprep.subr.mxu0 0.0
      %1331 = vmatpush1.msra.mxu0 0.0
      %1332 = vmatprep.subr.mxu0 0.0
      %1333 = vmatpush1.msra.mxu0 0.0
      %1334 = vmatprep.subr.mxu0 0.0
      %1335 = vmatpush1.msra.mxu0 0.0
      %1336 = vmatprep.subr.mxu0 0.0
      %1337 = vmatpush1.msra.mxu0 0.0
      %1338 = vmatprep.subr.mxu0 0.0
      %1339 = vmatpush1.msra.mxu0 0.0
      %1340 = vmatprep.subr.mxu0 0.0
      %1341 = vmatpush1.msra.mxu0 0.0
      %1342 = vmatprep.subr.mxu0 0.0
      %1343 = vmatpush1.msra.mxu0 0.0
      %1344 = vmatprep.subr.mxu0 0.0
      %1345 = vmatpush1.msra.mxu0 0.0
      %1346 = vmatprep.subr.mxu0 0.0
      %1347 = vmatpush1.msra.mxu0 0.0
      %1348 = vmatprep.subr.mxu0 0.0
      %1349 = vmatpush1.msra.mxu0 0.0
      %1350 = vmatprep.subr.mxu0 0.0
      %1351 = vmatpush1.msra.mxu0 0.0
      %1352 = vmatprep.subr.mxu0 0.0
      %1353 = vmatpush1.msra.mxu0 %v1320
      %1354 = vmatprep.subr.mxu0 0.0
      %1355 = vmatpush2.msra.mxu0 0.0
      %1356 = vmatprep.subr.mxu0 0.0
      %1357 = vmatpush2.msra.mxu0 0.0
      %1358 = vmatprep.subr.mxu0 0.0
      %1359 = vmatpush2.msra.mxu0 0.0
      %1360 = vmatprep.subr.mxu0 0.0
      %1361 = vmatpush2.msra.mxu0 0.0
      %1362 = vmatprep.subr.mxu0 0.0
      %1363 = vmatpush2.msra.mxu0 0.0
      %1364 = vmatprep.subr.mxu0 0.0
      %1365 = vmatpush2.msra.mxu0 0.0
      %1366 = vmatprep.subr.mxu0 0.0
      %1367 = vmatpush2.msra.mxu0 0.0
      %1368 = vmatprep.subr.mxu0 0.0
      %1369 = vmatpush2.msra.mxu0 0.0
      %1370 = vmatprep.subr.mxu0 0.0
      %1371 = vmatpush2.msra.mxu0 0.0
      %1372 = vmatprep.subr.mxu0 0.0
      %1373 = vmatpush2.msra.mxu0 0.0
      %1374 = vmatprep.subr.mxu0 0.0
      %1375 = vmatpush2.msra.mxu0 0.0
      %1376 = vmatprep.subr.mxu0 0.0
      %1377 = vmatpush2.msra.mxu0 0.0
      %1378 = vmatprep.subr.mxu0 0.0
      %1379 = vmatpush2.msra.mxu0 0.0
      %1380 = vmatprep.subr.mxu0 0.0
      %1381 = vmatpush2.msra.mxu0 0.0
      %1382 = vmatprep.subr.mxu0 0.0
      %1383 = vmatpush2.msra.mxu0 0.0
      %1384 = vmatprep.subr.mxu0 0.0
      %1385 = vmatpush2.msra.mxu0 0.0
      %1386 = vmatprep.mubr.f32.mxu0 0.0
      %1387 = vmatmul.mubr.f32.gmra.mxu0 %v1316
      %v1388 = vpop.f32.mrf.mxu0
      %v1389 = vadd.f32 0.0, %v1388
      %v1390 = vpop.f32.mrf.mxu0
      %1391 = vdwg.mxu0
      %1392 = vrot.lane.b32.xlu0 %v1085, 120
      %v1393 = vpop.permute.xlu0 %1392
      %1394 = vrot.lane.b32.xlu0 %v1152, 120
      %v1395 = vpop.permute.xlu0 %1394
      %v1396 = vsel %vm1224, %v1393, 0
      %v1398 = vsel %vm1224, %v1395, 0
      %1400 = vmatprep.subr.mxu0 0.0
      %1401 = vmatpush1.xpose.msra.mxu0 0.0
      %1402 = vmatprep.subr.mxu0 0.0
      %1403 = vmatpush1.xpose.msra.mxu0 0.0
      %1404 = vmatprep.subr.mxu0 0.0
      %1405 = vmatpush1.xpose.msra.mxu0 0.0
      %1406 = vmatprep.subr.mxu0 0.0
      %1407 = vmatpush1.xpose.msra.mxu0 0.0
      %1408 = vmatprep.subr.mxu0 0.0
      %1409 = vmatpush1.xpose.msra.mxu0 0.0
      %1410 = vmatprep.subr.mxu0 0.0
      %1411 = vmatpush1.xpose.msra.mxu0 0.0
      %1412 = vmatprep.subr.mxu0 0.0
      %1413 = vmatpush1.xpose.msra.mxu0 0.0
      %1414 = vmatprep.subr.mxu0 0.0
      %1415 = vmatpush1.xpose.msra.mxu0 0.0
      %1416 = vmatprep.subr.mxu0 0.0
      %1417 = vmatpush1.xpose.msra.mxu0 0.0
      %1418 = vmatprep.subr.mxu0 0.0
      %1419 = vmatpush1.xpose.msra.mxu0 0.0
      %1420 = vmatprep.subr.mxu0 0.0
      %1421 = vmatpush1.xpose.msra.mxu0 0.0
      %1422 = vmatprep.subr.mxu0 0.0
      %1423 = vmatpush1.xpose.msra.mxu0 0.0
      %1424 = vmatprep.subr.mxu0 0.0
      %1425 = vmatpush1.xpose.msra.mxu0 0.0
      %1426 = vmatprep.subr.mxu0 0.0
      %1427 = vmatpush1.xpose.msra.mxu0 0.0
      %1428 = vmatprep.subr.mxu0 0.0
      %1429 = vmatpush1.xpose.msra.mxu0 0.0
      %1430 = vmatprep.subr.mxu0 0.0
      %1431 = vmatpush1.xpose.msra.mxu0 %v1398
      %1432 = vmatprep.subr.mxu0 0.0
      %1433 = vmatpush2.xpose.msra.mxu0 0.0
      %1434 = vmatprep.subr.mxu0 0.0
      %1435 = vmatpush2.xpose.msra.mxu0 0.0
      %1436 = vmatprep.subr.mxu0 0.0
      %1437 = vmatpush2.xpose.msra.mxu0 0.0
      %1438 = vmatprep.subr.mxu0 0.0
      %1439 = vmatpush2.xpose.msra.mxu0 0.0
      %1440 = vmatprep.subr.mxu0 0.0
      %1441 = vmatpush2.xpose.msra.mxu0 0.0
      %1442 = vmatprep.subr.mxu0 0.0
      %1443 = vmatpush2.xpose.msra.mxu0 0.0
      %1444 = vmatprep.subr.mxu0 0.0
      %1445 = vmatpush2.xpose.msra.mxu0 0.0
      %1446 = vmatprep.subr.mxu0 0.0
      %1447 = vmatpush2.xpose.msra.mxu0 0.0
      %1448 = vmatprep.subr.mxu0 0.0
      %1449 = vmatpush2.xpose.msra.mxu0 0.0
      %1450 = vmatprep.subr.mxu0 0.0
      %1451 = vmatpush2.xpose.msra.mxu0 0.0
      %1452 = vmatprep.subr.mxu0 0.0
      %1453 = vmatpush2.xpose.msra.mxu0 0.0
      %1454 = vmatprep.subr.mxu0 0.0
      %1455 = vmatpush2.xpose.msra.mxu0 0.0
      %1456 = vmatprep.subr.mxu0 0.0
      %1457 = vmatpush2.xpose.msra.mxu0 0.0
      %1458 = vmatprep.subr.mxu0 0.0
      %1459 = vmatpush2.xpose.msra.mxu0 0.0
      %1460 = vmatprep.subr.mxu0 0.0
      %1461 = vmatpush2.xpose.msra.mxu0 0.0
      %1462 = vmatprep.subr.mxu0 0.0
      %1463 = vmatpush2.xpose.msra.mxu0 0.0
      %1464 = vmatprep.mubr.f32.mxu0 0.0
      %1465 = vmatmul.mubr.f32.gmra.mxu0 %v1396
      %v1466 = vpop.f32.mrf.mxu0
      %v1467 = vadd.f32 0.0, %v1466
      %v1468 = vpop.f32.mrf.mxu0
      %1469 = vdwg.mxu0
      %v1470 = vmul.f32 %v1467, 0.35355338
      %v1471 = vsel %vm1302, %v1470, -inf
      %1472 = vmax.xlane.f32.xlu0 %v1471
      %v1473 = vpop.xlane.xlu0 %1472
      %v1474 = vsub.f32 %v1470, %v1473
      %v1475 = vmul.f32 %v1474, 1.442695
      %v1476 = vpow.pop %v1475
      %v1477 = vsel %vm1302, %v1476, 0.0
      %1478 = vadd.xlane.f32.xlu0 %v1477
      %v1479 = vpop.xlane.xlu0 %1478
      %v1480 = vrcp.pop %v1479
      %v1481 = vmul.f32 %v1476, %v1480
      %1482 = vrot.lane.b32.xlu0 %v1219, 120
      %v1483 = vpop.permute.xlu0 %1482
      %v1485 = vsel %vm1314, %v1481, 0
      %v1487 = vsel %vm1318, %v1483, 0
      %1489 = vmatprep.subr.mxu0 0.0
      %1490 = vmatpush1.msra.mxu0 0.0
      %1491 = vmatprep.subr.mxu0 0.0
      %1492 = vmatpush1.msra.mxu0 0.0
      %1493 = vmatprep.subr.mxu0 0.0
      %1494 = vmatpush1.msra.mxu0 0.0
      %1495 = vmatprep.subr.mxu0 0.0
      %1496 = vmatpush1.msra.mxu0 0.0
      %1497 = vmatprep.subr.mxu0 0.0
      %1498 = vmatpush1.msra.mxu0 0.0
      %1499 = vmatprep.subr.mxu0 0.0
      %1500 = vmatpush1.msra.mxu0 0.0
      %1501 = vmatprep.subr.mxu0 0.0
      %1502 = vmatpush1.msra.mxu0 0.0
      %1503 = vmatprep.subr.mxu0 0.0
      %1504 = vmatpush1.msra.mxu0 0.0
      %1505 = vmatprep.subr.mxu0 0.0
      %1506 = vmatpush1.msra.mxu0 0.0
      %1507 = vmatprep.subr.mxu0 0.0
      %1508 = vmatpush1.msra.mxu0 0.0
      %1509 = vmatprep.subr.mxu0 0.0
      %1510 = vmatpush1.msra.mxu0 0.0
      %1511 = vmatprep.subr.mxu0 0.0
      %1512 = vmatpush1.msra.mxu0 0.0
      %1513 = vmatprep.subr.mxu0 0.0
      %1514 = vmatpush1.msra.mxu0 0.0
      %1515 = vmatprep.subr.mxu0 0.0
      %1516 = vmatpush1.msra.mxu0 0.0
      %1517 = vmatprep.subr.mxu0 0.0
      %1518 = vmatpush1.msra.mxu0 0.0
      %1519 = vmatprep.subr.mxu0 0.0
      %1520 = vmatpush1.msra.mxu0 %v1487
      %1521 = vmatprep.subr.mxu0 0.0
      %1522 = vmatpush2.msra.mxu0 0.0
      %1523 = vmatprep.subr.mxu0 0.0
      %1524 = vmatpush2.msra.mxu0 0.0
      %1525 = vmatprep.subr.mxu0 0.0
      %1526 = vmatpush2.msra.mxu0 0.0
      %1527 = vmatprep.subr.mxu0 0.0
      %1528 = vmatpush2.msra.mxu0 0.0
      %1529 = vmatprep.subr.mxu0 0.0
      %1530 = vmatpush2.msra.mxu0 0.0
      %1531 = vmatprep.subr.mxu0 0.0
      %1532 = vmatpush2.msra.mxu0 0.0
      %1533 = vmatprep.subr.mxu0 0.0
      %1534 = vmatpush2.msra.mxu0 0.0
      %1535 = vmatprep.subr.mxu0 0.0
      %1536 = vmatpush2.msra.mxu0 0.0
      %1537 = vmatprep.subr.mxu0 0.0
      %1538 = vmatpush2.msra.mxu0 0.0
      %1539 = vmatprep.subr.mxu0 0.0
      %1540 = vmatpush2.msra.mxu0 0.0
      %1541 = vmatprep.subr.mxu0 0.0
      %1542 = vmatpush2.msra.mxu0 0.0
      %1543 = vmatprep.subr.mxu0 0.0
      %1544 = vmatpush2.msra.mxu0 0.0
      %1545 = vmatprep.subr.mxu0 0.0
      %1546 = vmatpush2.msra.mxu0 0.0
      %1547 = vmatprep.subr.mxu0 0.0
      %1548 = vmatpush2.msra.mxu0 0.0
      %1549 = vmatprep.subr.mxu0 0.0
      %1550 = vmatpush2.msra.mxu0 0.0
      %1551 = vmatprep.subr.mxu0 0.0
      %1552 = vmatpush2.msra.mxu0 0.0
      %1553 = vmatprep.mubr.f32.mxu0 0.0
      %1554 = vmatmul.mubr.f32.gmra.mxu0 %v1485
      %v1555 = vpop.f32.mrf.mxu0
      %v1556 = vadd.f32 0.0, %v1555
      %v1557 = vpop.f32.mrf.mxu0
      %1558 = vdwg.mxu0
      %1559 = vrot.lane.b32.xlu0 %v1085, 112
      %v1560 = vpop.permute.xlu0 %1559
      %1561 = vrot.lane.b32.xlu0 %v1152, 112
      %v1562 = vpop.permute.xlu0 %1561
      %v1563 = vsel %vm1224, %v1560, 0
      %v1565 = vsel %vm1224, %v1562, 0
      %1567 = vmatprep.subr.mxu0 0.0
      %1568 = vmatpush1.xpose.msra.mxu0 0.0
      %1569 = vmatprep.subr.mxu0 0.0
      %1570 = vmatpush1.xpose.msra.mxu0 0.0
      %1571 = vmatprep.subr.mxu0 0.0
      %1572 = vmatpush1.xpose.msra.mxu0 0.0
      %1573 = vmatprep.subr.mxu0 0.0
      %1574 = vmatpush1.xpose.msra.mxu0 0.0
      %1575 = vmatprep.subr.mxu0 0.0
      %1576 = vmatpush1.xpose.msra.mxu0 0.0
      %1577 = vmatprep.subr.mxu0 0.0
      %1578 = vmatpush1.xpose.msra.mxu0 0.0
      %1579 = vmatprep.subr.mxu0 0.0
      %1580 = vmatpush1.xpose.msra.mxu0 0.0
      %1581 = vmatprep.subr.mxu0 0.0
      %1582 = vmatpush1.xpose.msra.mxu0 0.0
      %1583 = vmatprep.subr.mxu0 0.0
      %1584 = vmatpush1.xpose.msra.mxu0 0.0
      %1585 = vmatprep.subr.mxu0 0.0
      %1586 = vmatpush1.xpose.msra.mxu0 0.0
      %1587 = vmatprep.subr.mxu0 0.0
      %1588 = vmatpush1.xpose.msra.mxu0 0.0
      %1589 = vmatprep.subr.mxu0 0.0
      %1590 = vmatpush1.xpose.msra.mxu0 0.0
      %1591 = vmatprep.subr.mxu0 0.0
      %1592 = vmatpush1.xpose.msra.mxu0 0.0
      %1593 = vmatprep.subr.mxu0 0.0
      %1594 = vmatpush1.xpose.msra.mxu0 0.0
      %1595 = vmatprep.subr.mxu0 0.0
      %1596 = vmatpush1.xpose.msra.mxu0 0.0
      %1597 = vmatprep.subr.mxu0 0.0
      %1598 = vmatpush1.xpose.msra.mxu0 %v1565
      %1599 = vmatprep.subr.mxu0 0.0
      %1600 = vmatpush2.xpose.msra.mxu0 0.0
      %1601 = vmatprep.subr.mxu0 0.0
      %1602 = vmatpush2.xpose.msra.mxu0 0.0
      %1603 = vmatprep.subr.mxu0 0.0
      %1604 = vmatpush2.xpose.msra.mxu0 0.0
      %1605 = vmatprep.subr.mxu0 0.0
      %1606 = vmatpush2.xpose.msra.mxu0 0.0
      %1607 = vmatprep.subr.mxu0 0.0
      %1608 = vmatpush2.xpose.msra.mxu0 0.0
      %1609 = vmatprep.subr.mxu0 0.0
      %1610 = vmatpush2.xpose.msra.mxu0 0.0
      %1611 = vmatprep.subr.mxu0 0.0
      %1612 = vmatpush2.xpose.msra.mxu0 0.0
      %1613 = vmatprep.subr.mxu0 0.0
      %1614 = vmatpush2.xpose.msra.mxu0 0.0
      %1615 = vmatprep.subr.mxu0 0.0
      %1616 = vmatpush2.xpose.msra.mxu0 0.0
      %1617 = vmatprep.subr.mxu0 0.0
      %1618 = vmatpush2.xpose.msra.mxu0 0.0
      %1619 = vmatprep.subr.mxu0 0.0
      %1620 = vmatpush2.xpose.msra.mxu0 0.0
      %1621 = vmatprep.subr.mxu0 0.0
      %1622 = vmatpush2.xpose.msra.mxu0 0.0
      %1623 = vmatprep.subr.mxu0 0.0
      %1624 = vmatpush2.xpose.msra.mxu0 0.0
      %1625 = vmatprep.subr.mxu0 0.0
      %1626 = vmatpush2.xpose.msra.mxu0 0.0
      %1627 = vmatprep.subr.mxu0 0.0
      %1628 = vmatpush2.xpose.msra.mxu0 0.0
      %1629 = vmatprep.subr.mxu0 0.0
      %1630 = vmatpush2.xpose.msra.mxu0 0.0
      %1631 = vmatprep.mubr.f32.mxu0 0.0
      %1632 = vmatmul.mubr.f32.gmra.mxu0 %v1563
      %v1633 = vpop.f32.mrf.mxu0
      %v1634 = vadd.f32 0.0, %v1633
      %v1635 = vpop.f32.mrf.mxu0
      %1636 = vdwg.mxu0
      %v1637 = vmul.f32 %v1634, 0.35355338
      %v1638 = vsel %vm1302, %v1637, -inf
      %1639 = vmax.xlane.f32.xlu0 %v1638
      %v1640 = vpop.xlane.xlu0 %1639
      %v1641 = vsub.f32 %v1637, %v1640
      %v1642 = vmul.f32 %v1641, 1.442695
      %v1643 = vpow.pop %v1642
      %v1644 = vsel %vm1302, %v1643, 0.0
      %1645 = vadd.xlane.f32.xlu0 %v1644
      %v1646 = vpop.xlane.xlu0 %1645
      %v1647 = vrcp.pop %v1646
      %v1648 = vmul.f32 %v1643, %v1647
      %1649 = vrot.lane.b32.xlu0 %v1219, 112
      %v1650 = vpop.permute.xlu0 %1649
      %v1652 = vsel %vm1314, %v1648, 0
      %v1654 = vsel %vm1318, %v1650, 0
      %1656 = vmatprep.subr.mxu0 0.0
      %1657 = vmatpush1.msra.mxu0 0.0
      %1658 = vmatprep.subr.mxu0 0.0
      %1659 = vmatpush1.msra.mxu0 0.0
      %1660 = vmatprep.subr.mxu0 0.0
      %1661 = vmatpush1.msra.mxu0 0.0
      %1662 = vmatprep.subr.mxu0 0.0
      %1663 = vmatpush1.msra.mxu0 0.0
      %1664 = vmatprep.subr.mxu0 0.0
      %1665 = vmatpush1.msra.mxu0 0.0
      %1666 = vmatprep.subr.mxu0 0.0
      %1667 = vmatpush1.msra.mxu0 0.0
      %1668 = vmatprep.subr.mxu0 0.0
      %1669 = vmatpush1.msra.mxu0 0.0
      %1670 = vmatprep.subr.mxu0 0.0
      %1671 = vmatpush1.msra.mxu0 0.0
      %1672 = vmatprep.subr.mxu0 0.0
      %1673 = vmatpush1.msra.mxu0 0.0
      %1674 = vmatprep.subr.mxu0 0.0
      %1675 = vmatpush1.msra.mxu0 0.0
      %1676 = vmatprep.subr.mxu0 0.0
      %1677 = vmatpush1.msra.mxu0 0.0
      %1678 = vmatprep.subr.mxu0 0.0
      %1679 = vmatpush1.msra.mxu0 0.0
      %1680 = vmatprep.subr.mxu0 0.0
      %1681 = vmatpush1.msra.mxu0 0.0
      %1682 = vmatprep.subr.mxu0 0.0
      %1683 = vmatpush1.msra.mxu0 0.0
      %1684 = vmatprep.subr.mxu0 0.0
      %1685 = vmatpush1.msra.mxu0 0.0
      %1686 = vmatprep.subr.mxu0 0.0
      %1687 = vmatpush1.msra.mxu0 %v1654
      %1688 = vmatprep.subr.mxu0 0.0
      %1689 = vmatpush2.msra.mxu0 0.0
      %1690 = vmatprep.subr.mxu0 0.0
      %1691 = vmatpush2.msra.mxu0 0.0
      %1692 = vmatprep.subr.mxu0 0.0
      %1693 = vmatpush2.msra.mxu0 0.0
      %1694 = vmatprep.subr.mxu0 0.0
      %1695 = vmatpush2.msra.mxu0 0.0
      %1696 = vmatprep.subr.mxu0 0.0
      %1697 = vmatpush2.msra.mxu0 0.0
      %1698 = vmatprep.subr.mxu0 0.0
      %1699 = vmatpush2.msra.mxu0 0.0
      %1700 = vmatprep.subr.mxu0 0.0
      %1701 = vmatpush2.msra.mxu0 0.0
      %1702 = vmatprep.subr.mxu0 0.0
      %1703 = vmatpush2.msra.mxu0 0.0
      %1704 = vmatprep.subr.mxu0 0.0
      %1705 = vmatpush2.msra.mxu0 0.0
      %1706 = vmatprep.subr.mxu0 0.0
      %1707 = vmatpush2.msra.mxu0 0.0
      %1708 = vmatprep.subr.mxu0 0.0
      %1709 = vmatpush2.msra.mxu0 0.0
      %1710 = vmatprep.subr.mxu0 0.0
      %1711 = vmatpush2.msra.mxu0 0.0
      %1712 = vmatprep.subr.mxu0 0.0
      %1713 = vmatpush2.msra.mxu0 0.0
      %1714 = vmatprep.subr.mxu0 0.0
      %1715 = vmatpush2.msra.mxu0 0.0
      %1716 = vmatprep.subr.mxu0 0.0
      %1717 = vmatpush2.msra.mxu0 0.0
      %1718 = vmatprep.subr.mxu0 0.0
      %1719 = vmatpush2.msra.mxu0 0.0
      %1720 = vmatprep.mubr.f32.mxu0 0.0
      %1721 = vmatmul.mubr.f32.gmra.mxu0 %v1652
      %v1722 = vpop.f32.mrf.mxu0
      %v1723 = vadd.f32 0.0, %v1722
      %v1724 = vpop.f32.mrf.mxu0
      %1725 = vdwg.mxu0
      %1726 = vrot.lane.b32.xlu0 %v1085, 104
      %v1727 = vpop.permute.xlu0 %1726
      %1728 = vrot.lane.b32.xlu0 %v1152, 104
      %v1729 = vpop.permute.xlu0 %1728
      %v1730 = vsel %vm1224, %v1727, 0
      %v1732 = vsel %vm1224, %v1729, 0
      %1734 = vmatprep.subr.mxu0 0.0
      %1735 = vmatpush1.xpose.msra.mxu0 0.0
      %1736 = vmatprep.subr.mxu0 0.0
      %1737 = vmatpush1.xpose.msra.mxu0 0.0
      %1738 = vmatprep.subr.mxu0 0.0
      %1739 = vmatpush1.xpose.msra.mxu0 0.0
      %1740 = vmatprep.subr.mxu0 0.0
      %1741 = vmatpush1.xpose.msra.mxu0 0.0
      %1742 = vmatprep.subr.mxu0 0.0
      %1743 = vmatpush1.xpose.msra.mxu0 0.0
      %1744 = vmatprep.subr.mxu0 0.0
      %1745 = vmatpush1.xpose.msra.mxu0 0.0
      %1746 = vmatprep.subr.mxu0 0.0
      %1747 = vmatpush1.xpose.msra.mxu0 0.0
      %1748 = vmatprep.subr.mxu0 0.0
      %1749 = vmatpush1.xpose.msra.mxu0 0.0
      %1750 = vmatprep.subr.mxu0 0.0
      %1751 = vmatpush1.xpose.msra.mxu0 0.0
      %1752 = vmatprep.subr.mxu0 0.0
      %1753 = vmatpush1.xpose.msra.mxu0 0.0
      %1754 = vmatprep.subr.mxu0 0.0
      %1755 = vmatpush1.xpose.msra.mxu0 0.0
      %1756 = vmatprep.subr.mxu0 0.0
      %1757 = vmatpush1.xpose.msra.mxu0 0.0
      %1758 = vmatprep.subr.mxu0 0.0
      %1759 = vmatpush1.xpose.msra.mxu0 0.0
      %1760 = vmatprep.subr.mxu0 0.0
      %1761 = vmatpush1.xpose.msra.mxu0 0.0
      %1762 = vmatprep.subr.mxu0 0.0
      %1763 = vmatpush1.xpose.msra.mxu0 0.0
      %1764 = vmatprep.subr.mxu0 0.0
      %1765 = vmatpush1.xpose.msra.mxu0 %v1732
      %1766 = vmatprep.subr.mxu0 0.0
      %1767 = vmatpush2.xpose.msra.mxu0 0.0
      %1768 = vmatprep.subr.mxu0 0.0
      %1769 = vmatpush2.xpose.msra.mxu0 0.0
      %1770 = vmatprep.subr.mxu0 0.0
      %1771 = vmatpush2.xpose.msra.mxu0 0.0
      %1772 = vmatprep.subr.mxu0 0.0
      %1773 = vmatpush2.xpose.msra.mxu0 0.0
      %1774 = vmatprep.subr.mxu0 0.0
      %1775 = vmatpush2.xpose.msra.mxu0 0.0
      %1776 = vmatprep.subr.mxu0 0.0
      %1777 = vmatpush2.xpose.msra.mxu0 0.0
      %1778 = vmatprep.subr.mxu0 0.0
      %1779 = vmatpush2.xpose.msra.mxu0 0.0
      %1780 = vmatprep.subr.mxu0 0.0
      %1781 = vmatpush2.xpose.msra.mxu0 0.0
      %1782 = vmatprep.subr.mxu0 0.0
      %1783 = vmatpush2.xpose.msra.mxu0 0.0
      %1784 = vmatprep.subr.mxu0 0.0
      %1785 = vmatpush2.xpose.msra.mxu0 0.0
      %1786 = vmatprep.subr.mxu0 0.0
      %1787 = vmatpush2.xpose.msra.mxu0 0.0
      %1788 = vmatprep.subr.mxu0 0.0
      %1789 = vmatpush2.xpose.msra.mxu0 0.0
      %1790 = vmatprep.subr.mxu0 0.0
      %1791 = vmatpush2.xpose.msra.mxu0 0.0
      %1792 = vmatprep.subr.mxu0 0.0
      %1793 = vmatpush2.xpose.msra.mxu0 0.0
      %1794 = vmatprep.subr.mxu0 0.0
      %1795 = vmatpush2.xpose.msra.mxu0 0.0
      %1796 = vmatprep.subr.mxu0 0.0
      %1797 = vmatpush2.xpose.msra.mxu0 0.0
      %1798 = vmatprep.mubr.f32.mxu0 0.0
      %1799 = vmatmul.mubr.f32.gmra.mxu0 %v1730
      %v1800 = vpop.f32.mrf.mxu0
      %v1801 = vadd.f32 0.0, %v1800
      %v1802 = vpop.f32.mrf.mxu0
      %1803 = vdwg.mxu0
      %v1804 = vmul.f32 %v1801, 0.35355338
      %v1805 = vsel %vm1302, %v1804, -inf
      %1806 = vmax.xlane.f32.xlu0 %v1805
      %v1807 = vpop.xlane.xlu0 %1806
      %v1808 = vsub.f32 %v1804, %v1807
      %v1809 = vmul.f32 %v1808, 1.442695
      %v1810 = vpow.pop %v1809
      %v1811 = vsel %vm1302, %v1810, 0.0
      %1812 = vadd.xlane.f32.xlu0 %v1811
      %v1813 = vpop.xlane.xlu0 %1812
      %v1814 = vrcp.pop %v1813
      %v1815 = vmul.f32 %v1810, %v1814
      %1816 = vrot.lane.b32.xlu0 %v1219, 104
      %v1817 = vpop.permute.xlu0 %1816
      %v1819 = vsel %vm1314, %v1815, 0
      %v1821 = vsel %vm1318, %v1817, 0
      %1823 = vmatprep.subr.mxu0 0.0
      %1824 = vmatpush1.msra.mxu0 0.0
      %1825 = vmatprep.subr.mxu0 0.0
      %1826 = vmatpush1.msra.mxu0 0.0
      %1827 = vmatprep.subr.mxu0 0.0
      %1828 = vmatpush1.msra.mxu0 0.0
      %1829 = vmatprep.subr.mxu0 0.0
      %1830 = vmatpush1.msra.mxu0 0.0
      %1831 = vmatprep.subr.mxu0 0.0
      %1832 = vmatpush1.msra.mxu0 0.0
      %1833 = vmatprep.subr.mxu0 0.0
      %1834 = vmatpush1.msra.mxu0 0.0
      %1835 = vmatprep.subr.mxu0 0.0
      %1836 = vmatpush1.msra.mxu0 0.0
      %1837 = vmatprep.subr.mxu0 0.0
      %1838 = vmatpush1.msra.mxu0 0.0
      %1839 = vmatprep.subr.mxu0 0.0
      %1840 = vmatpush1.msra.mxu0 0.0
      %1841 = vmatprep.subr.mxu0 0.0
      %1842 = vmatpush1.msra.mxu0 0.0
      %1843 = vmatprep.subr.mxu0 0.0
      %1844 = vmatpush1.msra.mxu0 0.0
      %1845 = vmatprep.subr.mxu0 0.0
      %1846 = vmatpush1.msra.mxu0 0.0
      %1847 = vmatprep.subr.mxu0 0.0
      %1848 = vmatpush1.msra.mxu0 0.0
      %1849 = vmatprep.subr.mxu0 0.0
      %1850 = vmatpush1.msra.mxu0 0.0
      %1851 = vmatprep.subr.mxu0 0.0
      %1852 = vmatpush1.msra.mxu0 0.0
      %1853 = vmatprep.subr.mxu0 0.0
      %1854 = vmatpush1.msra.mxu0 %v1821
      %1855 = vmatprep.subr.mxu0 0.0
      %1856 = vmatpush2.msra.mxu0 0.0
      %1857 = vmatprep.subr.mxu0 0.0
      %1858 = vmatpush2.msra.mxu0 0.0
      %1859 = vmatprep.subr.mxu0 0.0
      %1860 = vmatpush2.msra.mxu0 0.0
      %1861 = vmatprep.subr.mxu0 0.0
      %1862 = vmatpush2.msra.mxu0 0.0
      %1863 = vmatprep.subr.mxu0 0.0
      %1864 = vmatpush2.msra.mxu0 0.0
      %1865 = vmatprep.subr.mxu0 0.0
      %1866 = vmatpush2.msra.mxu0 0.0
      %1867 = vmatprep.subr.mxu0 0.0
      %1868 = vmatpush2.msra.mxu0 0.0
      %1869 = vmatprep.subr.mxu0 0.0
      %1870 = vmatpush2.msra.mxu0 0.0
      %1871 = vmatprep.subr.mxu0 0.0
      %1872 = vmatpush2.msra.mxu0 0.0
      %1873 = vmatprep.subr.mxu0 0.0
      %1874 = vmatpush2.msra.mxu0 0.0
      %1875 = vmatprep.subr.mxu0 0.0
      %1876 = vmatpush2.msra.mxu0 0.0
      %1877 = vmatprep.subr.mxu0 0.0
      %1878 = vmatpush2.msra.mxu0 0.0
      %1879 = vmatprep.subr.mxu0 0.0
      %1880 = vmatpush2.msra.mxu0 0.0
      %1881 = vmatprep.subr.mxu0 0.0
      %1882 = vmatpush2.msra.mxu0 0.0
      %1883 = vmatprep.subr.mxu0 0.0
      %1884 = vmatpush2.msra.mxu0 0.0
      %1885 = vmatprep.subr.mxu0 0.0
      %1886 = vmatpush2.msra.mxu0 0.0
      %1887 = vmatprep.mubr.f32.mxu0 0.0
      %1888 = vmatmul.mubr.f32.gmra.mxu0 %v1819
      %v1889 = vpop.f32.mrf.mxu0
      %v1890 = vadd.f32 0.0, %v1889
      %v1891 = vpop.f32.mrf.mxu0
      %1892 = vdwg.mxu0
      %1894 = vrot.lane.b32.xlu0 %v1556, 8
      %v1895 = vpop.permute.xlu0 %1894
      %1898 = vrot.lane.b32.xlu0 %v1723, 16
      %v1899 = vpop.permute.xlu0 %1898
      %1902 = vrot.lane.b32.xlu0 %v1890, 24
      %v1903 = vpop.permute.xlu0 %1902
      %v1905 = vsel %vm1224, %v1389, %v1895
      %vm1906 = vcmask 130048
      %v1907 = vsel %vm1906, %v1905, %v1899
      %vm1908 = vcmask 195584
      %v1909 = vsel %vm1908, %v1907, %v1903
      %v1910 = vpack.c.bf16 %v1909, %v1909
      %v1911 = vld [vmem:[%s12] sm:$0xf]
      %v1912 = vld [vmem:[%s12 + $0x4] sm:$0xf]
      %v1913 = vld [vmem:[%s12 + $0x8] sm:$0xf]
      %v1914 = vld [vmem:[%s12 + $0xc] sm:$0xf]
      %v1915 = vld [vmem:[%s13] sm:$0x1]
      %v1917 = vlaneseq
      %v1918 = vshrl.u32 %v1917, 7
      %v1919 = vsub.s32 0, %v1918
      %v1920 = vrot.slane %v1915, %v1919
      %v1926 = vunpack.c.l.b16 %v1911
      %v1927 = vunpack.c.l.b16 %v1912
      %v1928 = vunpack.c.l.b16 %v1913
      %v1929 = vunpack.c.l.b16 %v1914
      %v1930 = vpack.c.b16 %v1927, %v1926
      %v1931 = vpack.c.b16 %v1929, %v1928
      %v1935 = vsel %vm751, %v1910, 0
      %1937 = vmatprep.subr.bf16.mxu0 0
      %1938 = vmatpush1.bf16.msra.mxu0 0
      %1939 = vmatprep.subr.bf16.mxu0 0
      %1940 = vmatpush1.bf16.msra.mxu0 0
      %1941 = vmatprep.subr.bf16.mxu0 0
      %1942 = vmatpush1.bf16.msra.mxu0 0
      %1943 = vmatprep.subr.bf16.mxu0 0
      %1944 = vmatpush1.bf16.msra.mxu0 0
      %1945 = vmatprep.subr.bf16.mxu0 0
      %1946 = vmatpush1.bf16.msra.mxu0 0
      %1947 = vmatprep.subr.bf16.mxu0 0
      %1948 = vmatpush1.bf16.msra.mxu0 0
      %1949 = vmatprep.subr.bf16.mxu0 0
      %1950 = vmatpush1.bf16.msra.mxu0 %v1931
      %1951 = vmatprep.subr.bf16.mxu0 0
      %1952 = vmatpush1.bf16.msra.mxu0 %v1930
      %1953 = vmatprep.subr.bf16.mxu0 0
      %1954 = vmatpush2.bf16.msra.mxu0 0
      %1955 = vmatprep.subr.bf16.mxu0 0
      %1956 = vmatpush2.bf16.msra.mxu0 0
      %1957 = vmatprep.subr.bf16.mxu0 0
      %1958 = vmatpush2.bf16.msra.mxu0 0
      %1959 = vmatprep.subr.bf16.mxu0 0
      %1960 = vmatpush2.bf16.msra.mxu0 0
      %1961 = vmatprep.subr.bf16.mxu0 0
      %1962 = vmatpush2.bf16.msra.mxu0 0
      %1963 = vmatprep.subr.bf16.mxu0 0
      %1964 = vmatpush2.bf16.msra.mxu0 0
      %1965 = vmatprep.subr.bf16.mxu0 0
      %1966 = vmatpush2.bf16.msra.mxu0 0
      %1967 = vmatprep.subr.bf16.mxu0 0
      %1968 = vmatpush2.bf16.msra.mxu0 0
      %1969 = vmatprep.mubr.bf16.mxu0 0
      %1970 = vmatmul.mubr.bf16.gmra.mxu0 %v1935
      %v1971 = vpop.f32.mrf.mxu0
      %v1972 = vadd.f32 %v1920, %v1971
      %v1973 = vpop.f32.mrf.mxu0
      %v1974 = vpop.f32.mrf.mxu0
      %v1975 = vpop.f32.mrf.mxu0
      %1976 = vdwg.mxu0
      %v1977 = vadd.f32 %v1972, %v839
      %v1978 = vld [vmem:[%s16] sm:$0x1]
      %v1979 = vld [vmem:[%s17] sm:$0x1]
      %v1980 = vsel %vm994, %v1977, 0.0
      %1981 = vadd.xlane.f32.xlu0 %v1980
      %v1982 = vpop.xlane.xlu0 %1981
      %v1983 = vmul.f32 %v1982, %v998
      %v1984 = vsub.f32 %v1977, %v1983
      %v1985 = vmul.f32 %v1984, %v1984
      %v1986 = vsel %vm994, %v1985, 0.0
      %1987 = vadd.xlane.f32.xlu0 %v1986
      %v1988 = vpop.xlane.xlu0 %1987
      %v1989 = vmul.f32 %v1988, %v998
      %v1990 = vadd.f32 %v1989, 1e-05
      %v1991 = vrsqrt.pop %v1990
      %v1992 = vmul.f32 %v1984, %v1991
      %v1994 = vlaneseq
      %v1995 = vshrl.u32 %v1994, 7
      %v1996 = vsub.s32 0, %v1995
      %v1997 = vrot.slane %v1978, %v1996
      %v1999 = vmul.f32 %v1992, %v1997
      %v2001 = vlaneseq
      %v2002 = vshrl.u32 %v2001, 7
      %v2003 = vsub.s32 0, %v2002
      %v2004 = vrot.slane %v1979, %v2003
      %v2006 = vadd.f32 %v1999, %v2004
      %v2007 = vpack.c.bf16 %v2006, %v2006
      %v2008 = vld [vmem:[%s18] sm:$0xf]
      %v2009 = vld [vmem:[%s18 + $0x4] sm:$0xf]
      %v2010 = vld [vmem:[%s18 + $0x8] sm:$0xf]
      %v2011 = vld [vmem:[%s18 + $0xc] sm:$0xf]
      %v2012 = vld [vmem:[%s19] sm:$0x1]
      %v2014 = vlaneseq
      %v2015 = vshrl.u32 %v2014, 7
      %v2016 = vsub.s32 0, %v2015
      %v2017 = vrot.slane %v2012, %v2016
      %v2023 = vunpack.c.l.b16 %v2008
      %v2024 = vunpack.c.l.b16 %v2009
      %v2025 = vunpack.c.l.b16 %v2010
      %v2026 = vunpack.c.l.b16 %v2011
      %v2027 = vpack.c.b16 %v2024, %v2023
      %v2028 = vpack.c.b16 %v2026, %v2025
      %v2032 = vsel %vm751, %v2007, 0
      %2034 = vmatprep.subr.bf16.mxu0 0
      %2035 = vmatpush1.bf16.msra.mxu0 0
      %2036 = vmatprep.subr.bf16.mxu0 0
      %2037 = vmatpush1.bf16.msra.mxu0 0
      %2038 = vmatprep.subr.bf16.mxu0 0
      %2039 = vmatpush1.bf16.msra.mxu0 0
      %2040 = vmatprep.subr.bf16.mxu0 0
      %2041 = vmatpush1.bf16.msra.mxu0 0
      %2042 = vmatprep.subr.bf16.mxu0 0
      %2043 = vmatpush1.bf16.msra.mxu0 0
      %2044 = vmatprep.subr.bf16.mxu0 0
      %2045 = vmatpush1.bf16.msra.mxu0 0
      %2046 = vmatprep.subr.bf16.mxu0 0
      %2047 = vmatpush1.bf16.msra.mxu0 %v2028
      %2048 = vmatprep.subr.bf16.mxu0 0
      %2049 = vmatpush1.bf16.msra.mxu0 %v2027
      %2050 = vmatprep.subr.bf16.mxu0 0
      %2051 = vmatpush2.bf16.msra.mxu0 0
      %2052 = vmatprep.subr.bf16.mxu0 0
      %2053 = vmatpush2.bf16.msra.mxu0 0
      %2054 = vmatprep.subr.bf16.mxu0 0
      %2055 = vmatpush2.bf16.msra.mxu0 0
      %2056 = vmatprep.subr.bf16.mxu0 0
      %2057 = vmatpush2.bf16.msra.mxu0 0
      %2058 = vmatprep.subr.bf16.mxu0 0
      %2059 = vmatpush2.bf16.msra.mxu0 0
      %2060 = vmatprep.subr.bf16.mxu0 0
      %2061 = vmatpush2.bf16.msra.mxu0 0
      %2062 = vmatprep.subr.bf16.mxu0 0
      %2063 = vmatpush2.bf16.msra.mxu0 0
      %2064 = vmatprep.subr.bf16.mxu0 0
      %2065 = vmatpush2.bf16.msra.mxu0 0
      %2066 = vmatprep.mubr.bf16.mxu0 0
      %2067 = vmatmul.mubr.bf16.gmra.mxu0 %v2032
      %v2068 = vpop.f32.mrf.mxu0
      %v2069 = vadd.f32 %v2017, %v2068
      %v2070 = vpop.f32.mrf.mxu0
      %v2071 = vpop.f32.mrf.mxu0
      %v2072 = vpop.f32.mrf.mxu0
      %2073 = vdwg.mxu0
      %v2074 = vxor.u32 %v2069, 2147483648
      %v2075 = vmul.f32 %v2074, 1.442695
      %v2076 = vpow.pop %v2075
      %v2077 = vadd.f32 %v2076, 1.0
      %v2078 = vrcp.pop %v2077
      %v2079 = vmul.f32 1.0, %v2078
      %v2080 = vmul.f32 %v2069, %v2079
      %2082 = vrot.lane.b32.xlu0 %v2080, 64
      %v2083 = vpop.permute.xlu0 %2082
      %v2085 = vmul.f32 %v2069, %v2083
      %v2086 = vpack.c.bf16 %v2085, %v2085
      %v2087 = vld [vmem:[%s20] sm:$0xf]
      %v2088 = vld [vmem:[%s20 + $0x4] sm:$0xf]
      %v2089 = vld [vmem:[%s20 + $0x8] sm:$0xf]
      %v2090 = vld [vmem:[%s20 + $0xc] sm:$0xf]
      %v2091 = vld [vmem:[%s20 + $0x10] sm:$0xf]
      %v2092 = vld [vmem:[%s20 + $0x14] sm:$0xf]
      %v2093 = vld [vmem:[%s20 + $0x18] sm:$0xf]
      %v2094 = vld [vmem:[%s20 + $0x1c] sm:$0xf]
      %v2095 = vld [vmem:[%s21] sm:$0x1]
      %v2097 = vlaneseq
      %v2098 = vshrl.u32 %v2097, 7
      %v2099 = vsub.s32 0, %v2098
      %v2100 = vrot.slane %v2095, %v2099
      %v2110 = vunpack.c.l.b16 %v2087
      %v2111 = vunpack.c.l.b16 %v2088
      %v2112 = vunpack.c.l.b16 %v2089
      %v2113 = vunpack.c.l.b16 %v2090
      %v2114 = vunpack.c.l.b16 %v2091
      %v2115 = vunpack.c.l.b16 %v2092
      %v2116 = vunpack.c.l.b16 %v2093
      %v2117 = vunpack.c.l.b16 %v2094
      %v2118 = vpack.c.b16 %v2111, %v2110
      %v2119 = vpack.c.b16 %v2113, %v2112
      %v2120 = vpack.c.b16 %v2115, %v2114
      %v2121 = vpack.c.b16 %v2117, %v2116
      %vm2126 = vcmask 523264
      %v2128 = vsel %vm2126, %v2086, 0
      %2130 = vmatprep.subr.bf16.mxu0 0
      %2131 = vmatpush1.bf16.msra.mxu0 0
      %2132 = vmatprep.subr.bf16.mxu0 0
      %2133 = vmatpush1.bf16.msra.mxu0 0
      %2134 = vmatprep.subr.bf16.mxu0 0
      %2135 = vmatpush1.bf16.msra.mxu0 0
      %2136 = vmatprep.subr.bf16.mxu0 0
      %2137 = vmatpush1.bf16.msra.mxu0 0
      %2138 = vmatprep.subr.bf16.mxu0 0
      %2139 = vmatpush1.bf16.msra.mxu0 %v2121
      %2140 = vmatprep.subr.bf16.mxu0 0
      %2141 = vmatpush1.bf16.msra.mxu0 %v2120
      %2142 = vmatprep.subr.bf16.mxu0 0
      %2143 = vmatpush1.bf16.msra.mxu0 %v2119
      %2144 = vmatprep.subr.bf16.mxu0 0
      %2145 = vmatpush1.bf16.msra.mxu0 %v2118
      %2146 = vmatprep.subr.bf16.mxu0 0
      %2147 = vmatpush2.bf16.msra.mxu0 0
      %2148 = vmatprep.subr.bf16.mxu0 0
      %2149 = vmatpush2.bf16.msra.mxu0 0
      %2150 = vmatprep.subr.bf16.mxu0 0
      %2151 = vmatpush2.bf16.msra.mxu0 0
      %2152 = vmatprep.subr.bf16.mxu0 0
      %2153 = vmatpush2.bf16.msra.mxu0 0
      %2154 = vmatprep.subr.bf16.mxu0 0
      %2155 = vmatpush2.bf16.msra.mxu0 0
      %2156 = vmatprep.subr.bf16.mxu0 0
      %2157 = vmatpush2.bf16.msra.mxu0 0
      %2158 = vmatprep.subr.bf16.mxu0 0
      %2159 = vmatpush2.bf16.msra.mxu0 0
      %2160 = vmatprep.subr.bf16.mxu0 0
      %2161 = vmatpush2.bf16.msra.mxu0 0
      %2162 = vmatprep.mubr.bf16.mxu0 0
      %2163 = vmatmul.mubr.bf16.gmra.mxu0 %v2128
      %v2164 = vpop.f32.mrf.mxu0
      %v2165 = vadd.f32 %v2100, %v2164
      %v2166 = vpop.f32.mrf.mxu0
      %v2167 = vpop.f32.mrf.mxu0
      %v2168 = vpop.f32.mrf.mxu0
      %2169 = vdwg.mxu0
      %v2170 = vadd.f32 %v2165, %v1977
      %2171 = vst.msk [vmem:[%s740] sm:$0x3] %vm994, %v2170
      %p2172 = scmp.lt.s32.totalorder %s33, 7
      %s2173 = scalar_select %p2172, %s33, 7
      %s2174 = smul.addr %s2173, 2
      %s2175 = scalar_lea.vmem %s22, %s2174
      // Predicated region
      $region109: #{transformer_forward.5} parent=107 // pred_check
        %p2176 = pneg %p538
      $region110: #{transformer_forward.5} parent=107 // pred_check_branch
        %2178 = sbr.rel (%p2176) target = $region112
      $region111: #{transformer_forward.5} parent=107 // pred_region
        _
      $region112: #{transformer_forward.5} parent=107 // pred_fallthru
        _
    $region108: #{transformer_forward.5} parent=5 // pred_fallthru
      _
    %p2179 = scmp.le.s32.totalorder 2, %s28
    // Predicated region
    $region113: #{transformer_forward.5} parent=5 // pred_check
      %p2180 = pneg %p2179
    $region114: #{transformer_forward.5} parent=5 // pred_check_branch
      %2182 = sbr.rel (%p2180) target = $region116
    $region115: #{transformer_forward.5} parent=5 // pred_region
      %s2183 = ssub.s32 %s28, 2
      // Predicated region
      $region117: #{transformer_forward.5} parent=115 // pred_check
        %p2184 = pneg %p544
      $region118: #{transformer_forward.5} parent=115 // pred_check_branch
        %2186 = sbr.rel (%p2184) target = $region120
      $region119: #{transformer_forward.5} parent=115 // pred_region
        %p2187 = scmp.lt.s32.totalorder %s34, 7
        %s2188 = scalar_select %p2187, %s34, 7
        %s2189 = smul.addr %s2188, 2
        %s2190 = scalar_lea.vmem %s22, %s2189
      $region120: #{transformer_forward.5} parent=115 // pred_fallthru
        _
    $region116: #{transformer_forward.5} parent=5 // pred_fallthru
      _
  $region6: #{transformer_forward.5} parent=0 // loop_footer
    %s32 = sadd.s32 1, %s28
  $region7: #{transformer_forward.5} parent=0 // loop_footer_branch
    %27 = sbr.rel target = $region3
  $region8: #{transformer_forward.5} parent=0 // loop_exit
    _

</llo_original>
